<compile_context>
chip_gen: v6e
topology: v6e:2x2x1
jax: 0.10.0
libtpu: 0.0.40
codegen_flags: <defaults>
</compile_context>

<pallas_src>
import functools

import jax
import jax.numpy as jnp
from jax.experimental import pallas as pl
from jax.experimental.pallas import tpu as pltpu

IN_DIM = 784       # 28 * 28 logical input features
HID = 256
HEAD_ROWS = 8      # sublane-aligned padding of the single output unit


def _default_epilogue_dtype():
    """bf16 epilogue on bf16-VPU chips (v6e/v7x), f32 otherwise (v5e and older)."""
    try:
        kind = jax.devices()[0].device_kind.lower()
    except Exception:
        return jnp.bfloat16
    if any(tag in kind for tag in ("v2", "v3", "v4", "v5")):
        return jnp.float32
    return jnp.bfloat16


def _pick_block_b(B):
    """Largest MXU-aligned batch tile (<=1024) that still gives >=2 grid steps
    (keeps both v7x TensorCores busy); tiny batches fall back to one tile."""
    for blk in (1024, 512, 256, 128):
        if pl.cdiv(B, blk) >= 2:
            return blk
    return 128


def discriminator_kernel(x_ref, w1_ref, b1_ref, w2_ref, b2_ref, w3t_ref,
                         b3_ref, o_ref):
    """Fused MLP forward for one (block_b, 784) batch tile.

    Matmuls run on the MXU in the weight dtype (bf16 by default) with f32
    accumulation; bias/LeakyReLU epilogues run in the bias dtype (bf16 on
    v6e/v7x, f32 on v5e); the sigmoid head is exact f32.
    """
    # Cast in VMEM -- x stays in its original dtype in HBM (no pre-pass).
    x = x_ref[...].astype(w1_ref.dtype)                           # (tb, 784)

    # Linear(784 -> 256) + LeakyReLU(0.2)
    h1 = jnp.dot(x, w1_ref[...], preferred_element_type=jnp.float32)
    h1 = h1.astype(b1_ref.dtype) + b1_ref[...]
    h1 = jnp.where(h1 > 0, h1, 0.2 * h1)                          # (tb, 256)

    # Linear(256 -> 256) + LeakyReLU(0.2)
    h2 = jnp.dot(h1.astype(w2_ref.dtype), w2_ref[...],
                 preferred_element_type=jnp.float32)
    h2 = h2.astype(b2_ref.dtype) + b2_ref[...]
    h2 = jnp.where(h2 > 0, h2, 0.2 * h2)                          # (tb, 256)

    # Head, transposed & lane-dense: logits[r, j] = sum_k w3t[r, k] * h2[j, k].
    # Only row 0 of w3t / b3 is real; rows 1..7 are zero padding so the MXU
    # tile and the output store stay (8, 128)-aligned and unmasked.
    logits = jax.lax.dot_general(
        w3t_ref[...], h2.astype(w3t_ref.dtype),
        dimension_numbers=(((1,), (1,)), ((), ())),
        preferred_element_type=jnp.float32)                       # (8, tb) f32
    z = logits + b3_ref[...]                                      # + (8, 1)
    sig = 1.0 / (1.0 + jnp.exp(-z))                               # exact sigmoid
    o_ref[...] = sig[None].astype(o_ref.dtype)                    # (1, 8, tb)


def prepare_params(params, compute_dtype=jnp.bfloat16, epilogue_dtype=None):
    """One-time weight prep (transpose / cast / head padding), hoisted out of
    the per-step forward so weights are not re-materialized every call."""
    if epilogue_dtype is None:
        epilogue_dtype = _default_epilogue_dtype()
    w1, b1, w2, b2, w3, b3 = params                 # PyTorch layout: w (out, in)
    w1c = jnp.asarray(w1.T, compute_dtype)                        # (784, 256)
    w2c = jnp.asarray(w2.T, compute_dtype)                        # (256, 256)
    w3t = jnp.zeros((HEAD_ROWS, HID), compute_dtype
                    ).at[0, :].set(w3.reshape(HID).astype(compute_dtype))
    b1c = jnp.asarray(b1.reshape(1, HID), epilogue_dtype)
    b2c = jnp.asarray(b2.reshape(1, HID), epilogue_dtype)
    b3c = jnp.zeros((HEAD_ROWS, 1), jnp.float32).at[0, 0].set(b3[0])
    return (w1c, b1c, w2c, b2c, w3t, b3c)


@functools.partial(jax.jit, static_argnames=("block_b",))
def discriminator_forward(x, prepared_params, block_b=None):
    """x: (B, 784) float32 (or bfloat16) -> (B, 1) float32 probabilities."""
    w1c, b1c, w2c, b2c, w3t, b3c = prepared_params
    B, in_dim = x.shape
    if block_b is None:
        block_b = _pick_block_b(B)
    n_tiles = pl.cdiv(B, block_b)
    B_pad = n_tiles * block_b
    if B_pad != B:                     # pad batch rows only, only when needed
        x = jnp.pad(x, ((0, B_pad - B), (0, 0)))

    x_bytes = B_pad * in_dim * x.dtype.itemsize
    w_bytes = ((w1c.size + w2c.size + w3t.size) * w1c.dtype.itemsize
               + (b1c.size + b2c.size) * b1c.dtype.itemsize + b3c.size * 4)
    cost = pl.CostEstimate(
        flops=2 * B_pad * (in_dim * HID + HID * HID + HID * HEAD_ROWS),
        transcendentals=B_pad * HEAD_ROWS,
        bytes_accessed=x_bytes + w_bytes + n_tiles * HEAD_ROWS * block_b * 4,
    )

    out = pl.pallas_call(
        discriminator_kernel,
        out_shape=jax.ShapeDtypeStruct((n_tiles, HEAD_ROWS, block_b),
                                       jnp.float32),
        grid_spec=pltpu.PrefetchScalarGridSpec(
            num_scalar_prefetch=0,
            grid=(n_tiles,),
            in_specs=[
                # batch tile of x, full (unpadded) feature width
                pl.BlockSpec((block_b, in_dim), lambda i: (i, 0)),
                # weights / biases: constant index_map -> resident in VMEM
                pl.BlockSpec((in_dim, HID), lambda i: (0, 0)),
                pl.BlockSpec((1, HID), lambda i: (0, 0)),
                pl.BlockSpec((HID, HID), lambda i: (0, 0)),
                pl.BlockSpec((1, HID), lambda i: (0, 0)),
                pl.BlockSpec((HEAD_ROWS, HID), lambda i: (0, 0)),
                pl.BlockSpec((HEAD_ROWS, 1), lambda i: (0, 0)),
            ],
            out_specs=pl.BlockSpec((1, HEAD_ROWS, block_b),
                                   lambda i: (i, 0, 0)),
        ),
        compiler_params=pltpu.CompilerParams(
            dimension_semantics=("parallel",),
            vmem_limit_bytes=32 * 1024 * 1024,   # block_b=1024 fits on v5e too
        ),
        cost_estimate=cost,
    )(x, w1c, b1c, w2c, b2c, w3t, b3c)

    # Row 0 of each (8, block_b) tile holds the real sigmoid outputs.
    return out[:, 0, :].reshape(B_pad, 1)[:B]


def init_params(key):
    """Deterministic synthetic parameters, PyTorch nn.Linear layout/init."""
    ks = jax.random.split(key, 6)

    def linear(kw, kb, fan_in, fan_out):
        bound = 1.0 / (fan_in ** 0.5)
        w = jax.random.uniform(kw, (fan_out, fan_in), jnp.float32, -bound, bound)
        b = jax.random.uniform(kb, (fan_out,), jnp.float32, -bound, bound)
        return w, b

    w1, b1 = linear(ks[0], ks[1], IN_DIM, HID)
    w2, b2 = linear(ks[2], ks[3], HID, HID)
    w3, b3 = linear(ks[4], ks[5], HID, 1)
    return (w1, b1, w2, b2, w3, b3)


def reference_forward(x, params):
    """Pure-JAX f32 reference of the PyTorch Discriminator.forward."""
    w1, b1, w2, b2, w3, b3 = params
    h = x @ w1.T + b1
    h = jnp.where(h > 0, h, 0.2 * h)
    h = h @ w2.T + b2
    h = jnp.where(h > 0, h, 0.2 * h)
    return jax.nn.sigmoid(h @ w3.T + b3)


if __name__ == "__main__":
    key = jax.random.PRNGKey(0)
    k_x, k_p = jax.random.split(key)

    params = init_params(k_p)

    # B=512 -> block_b=256 -> grid=(2,): both v7x TensorCores get a tile and no
    # batch padding / no x pre-pass is required.
    B = 512
    x = jax.random.normal(k_x, (B, IN_DIM), dtype=jnp.float32)
    ref = reference_forward(x, params)

    # Default path: bf16 MXU operands, f32 accumulation, exact sigmoid.
    prep = prepare_params(params)
    out = jax.block_until_ready(discriminator_forward(x, prep))
    assert out.shape == (B, 1)
    assert jnp.allclose(out, ref, atol=3e-2, rtol=0), "bf16 kernel mismatch"

    # Ragged batch: exercises the batch-pad + smaller-tile path.
    B2 = 200
    out2 = jax.block_until_ready(discriminator_forward(x[:B2], prep))
    assert out2.shape == (B2, 1)
    assert jnp.allclose(out2, ref[:B2], atol=3e-2, rtol=0), "ragged-batch mismatch"

    # f32 operand path: tighter structural / padding check.
    prep_f32 = prepare_params(params, compute_dtype=jnp.float32,
                              epilogue_dtype=jnp.float32)
    out_f32 = jax.block_until_ready(discriminator_forward(x, prep_f32))
    assert jnp.allclose(out_f32, ref, atol=1e-2, rtol=0), "f32 kernel mismatch"

    print("KERNEL_OK")
</pallas_src>

<mosaic_0001>
module attributes {stable_mosaic.version = 11 : i64} {
  func.func @discriminator_kernel(%arg0: i32, %arg1: memref<256x784xf32, #tpu.memory_space<vmem>>, %arg2: memref<784x256xbf16, #tpu.memory_space<vmem>>, %arg3: memref<1x256xbf16, #tpu.memory_space<vmem>>, %arg4: memref<256x256xbf16, #tpu.memory_space<vmem>>, %arg5: memref<1x256xbf16, #tpu.memory_space<vmem>>, %arg6: memref<8x256xbf16, #tpu.memory_space<vmem>>, %arg7: memref<8x1xf32, #tpu.memory_space<vmem>>, %arg8: memref<1x8x256xf32, #tpu.memory_space<vmem>>) attributes {dimension_semantics = [#tpu.dimension_semantics<parallel>], iteration_bounds = array<i64: 2>, scalar_prefetch = 0 : i64, scratch_operands = 0 : i64, tpu.core_type = #tpu.core_type<tc>, window_params = [{transform_indices = @transform_0, window_bounds = array<i64: 256, 784>}, {pipeline_mode = #tpu.pipeline_mode<synchronous>, transform_indices = @transform_1, window_bounds = array<i64: 784, 256>}, {pipeline_mode = #tpu.pipeline_mode<synchronous>, transform_indices = @transform_2, window_bounds = array<i64: 1, 256>}, {pipeline_mode = #tpu.pipeline_mode<synchronous>, transform_indices = @transform_3, window_bounds = array<i64: 256, 256>}, {pipeline_mode = #tpu.pipeline_mode<synchronous>, transform_indices = @transform_4, window_bounds = array<i64: 1, 256>}, {pipeline_mode = #tpu.pipeline_mode<synchronous>, transform_indices = @transform_5, window_bounds = array<i64: 8, 256>}, {pipeline_mode = #tpu.pipeline_mode<synchronous>, transform_indices = @transform_6, window_bounds = array<i64: 8, 1>}, {transform_indices = @transform_7, window_bounds = array<i64: 1, 8, 256>}]} {
    %c0 = arith.constant 0 : index
    %c0_0 = arith.constant 0 : index
    %0 = vector.load %arg1[%c0, %c0_0] : memref<256x784xf32, #tpu.memory_space<vmem>>, vector<256x784xf32>
    %1 = arith.truncf %0 : vector<256x784xf32> to vector<256x784xbf16>
    %c0_1 = arith.constant 0 : index
    %c0_2 = arith.constant 0 : index
    %2 = vector.load %arg2[%c0_1, %c0_2] : memref<784x256xbf16, #tpu.memory_space<vmem>>, vector<784x256xbf16>
    %cst = arith.constant dense<0.000000e+00> : vector<256x256xf32>
    %3 = tpu.matmul %1, %2, %cst {dimension_numbers = #tpu.dot_dimension_numbers<[1], [0], [0], [1], [0, 0, 1, 1], [], []>} : vector<256x784xbf16>, vector<784x256xbf16>, vector<256x256xf32> -> vector<256x256xf32>
    %4 = arith.truncf %3 : vector<256x256xf32> to vector<256x256xbf16>
    %c0_3 = arith.constant 0 : index
    %c0_4 = arith.constant 0 : index
    %5 = vector.load %arg3[%c0_3, %c0_4] : memref<1x256xbf16, #tpu.memory_space<vmem>>, vector<1x256xbf16>
    %6 = vector.broadcast %5 : vector<1x256xbf16> to vector<256x256xbf16>
    %7 = arith.addf %4, %6 : vector<256x256xbf16>
    %cst_5 = arith.constant 0.000000e+00 : bf16
    %8 = vector.broadcast %cst_5 : bf16 to vector<256x256xbf16>
    %9 = arith.cmpf ogt, %7, %8 : vector<256x256xbf16>
    %cst_6 = arith.constant 2.001950e-01 : bf16
    %10 = vector.broadcast %cst_6 : bf16 to vector<256x256xbf16>
    %11 = arith.mulf %10, %7 : vector<256x256xbf16>
    %12 = arith.select %9, %7, %11 : vector<256x256xi1>, vector<256x256xbf16>
    %c0_7 = arith.constant 0 : index
    %c0_8 = arith.constant 0 : index
    %13 = vector.load %arg4[%c0_7, %c0_8] : memref<256x256xbf16, #tpu.memory_space<vmem>>, vector<256x256xbf16>
    %cst_9 = arith.constant dense<0.000000e+00> : vector<256x256xf32>
    %14 = tpu.matmul %12, %13, %cst_9 {dimension_numbers = #tpu.dot_dimension_numbers<[1], [0], [0], [1], [0, 0, 1, 1], [], []>} : vector<256x256xbf16>, vector<256x256xbf16>, vector<256x256xf32> -> vector<256x256xf32>
    %15 = arith.truncf %14 : vector<256x256xf32> to vector<256x256xbf16>
    %c0_10 = arith.constant 0 : index
    %c0_11 = arith.constant 0 : index
    %16 = vector.load %arg5[%c0_10, %c0_11] : memref<1x256xbf16, #tpu.memory_space<vmem>>, vector<1x256xbf16>
    %17 = vector.broadcast %16 : vector<1x256xbf16> to vector<256x256xbf16>
    %18 = arith.addf %15, %17 : vector<256x256xbf16>
    %cst_12 = arith.constant 0.000000e+00 : bf16
    %19 = vector.broadcast %cst_12 : bf16 to vector<256x256xbf16>
    %20 = arith.cmpf ogt, %18, %19 : vector<256x256xbf16>
    %cst_13 = arith.constant 2.001950e-01 : bf16
    %21 = vector.broadcast %cst_13 : bf16 to vector<256x256xbf16>
    %22 = arith.mulf %21, %18 : vector<256x256xbf16>
    %23 = arith.select %20, %18, %22 : vector<256x256xi1>, vector<256x256xbf16>
    %c0_14 = arith.constant 0 : index
    %c0_15 = arith.constant 0 : index
    %24 = vector.load %arg6[%c0_14, %c0_15] : memref<8x256xbf16, #tpu.memory_space<vmem>>, vector<8x256xbf16>
    %cst_16 = arith.constant dense<0.000000e+00> : vector<8x256xf32>
    %25 = tpu.matmul %24, %23, %cst_16 {dimension_numbers = #tpu.dot_dimension_numbers<[1], [1], [0], [0], [0, 0, 1, 0], [], []>} : vector<8x256xbf16>, vector<256x256xbf16>, vector<8x256xf32> -> vector<8x256xf32>
    %c0_17 = arith.constant 0 : index
    %c0_18 = arith.constant 0 : index
    %26 = vector.load %arg7[%c0_17, %c0_18] : memref<8x1xf32, #tpu.memory_space<vmem>>, vector<8x1xf32>
    %27 = vector.broadcast %26 : vector<8x1xf32> to vector<8x256xf32>
    %28 = arith.addf %25, %27 : vector<8x256xf32>
    %cst_19 = arith.constant 0.000000e+00 : f32
    %29 = vector.broadcast %cst_19 : f32 to vector<8x256xf32>
    %30 = arith.subf %29, %28 : vector<8x256xf32>
    %31 = math.exp %30 : vector<8x256xf32>
    %cst_20 = arith.constant 1.000000e+00 : f32
    %32 = vector.broadcast %cst_20 : f32 to vector<8x256xf32>
    %33 = arith.addf %32, %31 : vector<8x256xf32>
    %cst_21 = arith.constant 1.000000e+00 : f32
    %34 = vector.broadcast %cst_21 : f32 to vector<8x256xf32>
    %35 = arith.divf %34, %33 : vector<8x256xf32>
    %36 = vector.shape_cast %35 : vector<8x256xf32> to vector<1x8x256xf32>
    %c0_22 = arith.constant 0 : index
    %c0_23 = arith.constant 0 : index
    %c0_24 = arith.constant 0 : index
    %37 = vector.load %arg8[%c0_22, %c0_23, %c0_24] : memref<1x8x256xf32, #tpu.memory_space<vmem>>, vector<1x8x256xf32>
    tpu.vector_store %arg8[%c0_22, %c0_23, %c0_24], %36 {strides = array<i32>} : memref<1x8x256xf32, #tpu.memory_space<vmem>>, vector<1x8x256xf32>,
    return
  }
  func.func @transform_0(%arg0: i32) -> (i32, i32) {
    %c0_i32 = arith.constant 0 : i32
    %c0_i32_0 = arith.constant 0 : i32
    return %arg0, %c0_i32 : i32, i32
  }
  func.func @transform_1(%arg0: i32) -> (i32, i32) {
    %c0_i32 = arith.constant 0 : i32
    %c0_i32_0 = arith.constant 0 : i32
    %c0_i32_1 = arith.constant 0 : i32
    return %c0_i32, %c0_i32_0 : i32, i32
  }
  func.func @transform_2(%arg0: i32) -> (i32, i32) {
    %c0_i32 = arith.constant 0 : i32
    %c0_i32_0 = arith.constant 0 : i32
    %c0_i32_1 = arith.constant 0 : i32
    return %c0_i32, %c0_i32_0 : i32, i32
  }
  func.func @transform_3(%arg0: i32) -> (i32, i32) {
    %c0_i32 = arith.constant 0 : i32
    %c0_i32_0 = arith.constant 0 : i32
    %c0_i32_1 = arith.constant 0 : i32
    return %c0_i32, %c0_i32_0 : i32, i32
  }
  func.func @transform_4(%arg0: i32) -> (i32, i32) {
    %c0_i32 = arith.constant 0 : i32
    %c0_i32_0 = arith.constant 0 : i32
    %c0_i32_1 = arith.constant 0 : i32
    return %c0_i32, %c0_i32_0 : i32, i32
  }
  func.func @transform_5(%arg0: i32) -> (i32, i32) {
    %c0_i32 = arith.constant 0 : i32
    %c0_i32_0 = arith.constant 0 : i32
    %c0_i32_1 = arith.constant 0 : i32
    return %c0_i32, %c0_i32_0 : i32, i32
  }
  func.func @transform_6(%arg0: i32) -> (i32, i32) {
    %c0_i32 = arith.constant 0 : i32
    %c0_i32_0 = arith.constant 0 : i32
    %c0_i32_1 = arith.constant 0 : i32
    return %c0_i32, %c0_i32_0 : i32, i32
  }
  func.func @transform_7(%arg0: i32) -> (i32, i32, i32) {
    %c0_i32 = arith.constant 0 : i32
    %c0_i32_0 = arith.constant 0 : i32
    %c0_i32_1 = arith.constant 0 : i32
    return %arg0, %c0_i32, %c0_i32_0 : i32, i32, i32
  }
}

</mosaic_0001>

<llo_original>
// kernel: discriminator_forward.1
$region0: #{discriminator_forward.1}
  #allocation0 [shape = 'u32[]', space=smem, size = 0x4, offset = 0x4, fixed_abs, tag = 'smem constant byte address 0x4 - core index']
  #allocation1 [shape = 'u32[144,128]{1,0:T(1,128)}', space=vmem, size = 0x12000, scoped, tag = 'internal scratch']
  %s0 = inlined_call_operand.vmem [shape: f32[512,784], index: 0, kind: input, shape index: {}]
  %s1 = inlined_call_operand.vmem [shape: bf16[784,256], index: 1, kind: input, shape index: {}]
  %s2 = inlined_call_operand.vmem [shape: bf16[1,256], index: 2, kind: input, shape index: {}]
  %s3 = inlined_call_operand.vmem [shape: bf16[256,256], index: 3, kind: input, shape index: {}]
  %s4 = inlined_call_operand.vmem [shape: bf16[1,256], index: 4, kind: input, shape index: {}]
  %s5 = inlined_call_operand.vmem [shape: bf16[8,256], index: 5, kind: input, shape index: {}]
  %s6 = inlined_call_operand.vmem [shape: f32[8,1], index: 6, kind: input, shape index: {}]
  %s7 = inlined_call_operand.vmem [shape: f32[2,8,256], index: 7, kind: output, shape index: {}]
  %s8 = sld [smem:[#allocation0]]
  $region61: #{discriminator_forward.1} parent=0
    _
  %s10 = ssub.s32 1, %s8
  %s11 = scalar_select 0, %s10, %s8
  loop: start=0, step=1, limit=4
  $region2: #{discriminator_forward.1} parent=0 // loop_pre_header
    _
  $region3: #{discriminator_forward.1} parent=0 // loop_header
    %s13 = sphi 0, %s17
    %p14 = scmp.ge.s32.totalorder %s13, 4
    %s23 = sphi 0, %s25
    %s26 = sphi 0, %s23
    %s27 = sphi 0, %s26
    %s43 = sphi 0, %s27
    %s47 = sphi 0, %s47
    %s49 = sphi 0, %s47
    %s50 = sphi 0, %s49
    %s64 = sphi 0, %s50
    %s68 = sphi 0, %s68
    %s70 = sphi 0, %s68
    %s71 = sphi 0, %s70
    %s85 = sphi 0, %s71
    %s89 = sphi 0, %s89
    %s91 = sphi 0, %s89
    %s92 = sphi 0, %s91
    %s106 = sphi 0, %s92
    %s110 = sphi 0, %s110
    %s112 = sphi 0, %s110
    %s113 = sphi 0, %s112
    %s127 = sphi 0, %s113
    %s131 = sphi 0, %s131
    %s133 = sphi 0, %s131
    %s134 = sphi 0, %s133
    %s148 = sphi 0, %s134
    %s152 = sphi 0, %s152
    %s154 = sphi 0, %s152
    %s155 = sphi 0, %s154
    %s169 = sphi 0, %s155
    %s175 = sphi 0, %s177
    %s178 = sphi 0, %s175
    %s179 = sphi 0, %s178
    %s195 = sphi 0, %s179
  $region4: #{discriminator_forward.1} parent=0 // loop_header_branch
    %16 = sbr.rel (%p14) target = $region8
  $region5: #{discriminator_forward.1} parent=0 // loop_body
    %s18 = ssub.s32 %s13, 1
    %s19 = ssub.s32 %s13, 2
    %s20 = sadd.s32 %s13, 1
    %s21 = ssub.s32 %s13, %s20
    %p22 = scmp.eq.s32.totalorder %s21, 0
    %s24 = sadd.s32 %s23, 1
    %s25 = scalar_select %p22, %s23, %s24
    %p28 = pneg %p22
    %p29 = scmp.eq.s32.totalorder %s13, 1
    %p30 = por %p28, %p29
    %p31 = scmp.ne.s32.totalorder %s23, %s26
    %p32 = scmp.eq.s32.totalorder %s13, 0
    %p33 = por %p31, %p32
    %p34 = scmp.ne.s32.totalorder %s23, %s26
    %p35 = scmp.eq.s32.totalorder %s18, 1
    %p36 = por %p34, %p35
    %p37 = scmp.ne.s32.totalorder %s26, %s27
    %p38 = scmp.eq.s32.totalorder %s18, 0
    %p39 = por %p37, %p38
    %p40 = scmp.ne.s32.totalorder %s26, %s27
    %p41 = scmp.eq.s32.totalorder %s19, 1
    %p42 = por %p40, %p41
    %p44 = scmp.ne.s32.totalorder %s27, %s43
    %p45 = scmp.eq.s32.totalorder %s19, 0
    %p46 = por %p44, %p45
    %s48 = sadd.s32 %s47, 1
    %p51 = scmp.eq.s32.totalorder %s13, 1
    %p52 = scmp.ne.s32.totalorder %s47, %s49
    %p53 = scmp.eq.s32.totalorder %s13, 0
    %p54 = por %p52, %p53
    %p55 = scmp.ne.s32.totalorder %s47, %s49
    %p56 = scmp.eq.s32.totalorder %s18, 1
    %p57 = por %p55, %p56
    %p58 = scmp.ne.s32.totalorder %s49, %s50
    %p59 = scmp.eq.s32.totalorder %s18, 0
    %p60 = por %p58, %p59
    %p61 = scmp.ne.s32.totalorder %s49, %s50
    %p62 = scmp.eq.s32.totalorder %s19, 1
    %p63 = por %p61, %p62
    %p65 = scmp.ne.s32.totalorder %s50, %s64
    %p66 = scmp.eq.s32.totalorder %s19, 0
    %p67 = por %p65, %p66
    %s69 = sadd.s32 %s68, 1
    %p72 = scmp.eq.s32.totalorder %s13, 1
    %p73 = scmp.ne.s32.totalorder %s68, %s70
    %p74 = scmp.eq.s32.totalorder %s13, 0
    %p75 = por %p73, %p74
    %p76 = scmp.ne.s32.totalorder %s68, %s70
    %p77 = scmp.eq.s32.totalorder %s18, 1
    %p78 = por %p76, %p77
    %p79 = scmp.ne.s32.totalorder %s70, %s71
    %p80 = scmp.eq.s32.totalorder %s18, 0
    %p81 = por %p79, %p80
    %p82 = scmp.ne.s32.totalorder %s70, %s71
    %p83 = scmp.eq.s32.totalorder %s19, 1
    %p84 = por %p82, %p83
    %p86 = scmp.ne.s32.totalorder %s71, %s85
    %p87 = scmp.eq.s32.totalorder %s19, 0
    %p88 = por %p86, %p87
    %s90 = sadd.s32 %s89, 1
    %p93 = scmp.eq.s32.totalorder %s13, 1
    %p94 = scmp.ne.s32.totalorder %s89, %s91
    %p95 = scmp.eq.s32.totalorder %s13, 0
    %p96 = por %p94, %p95
    %p97 = scmp.ne.s32.totalorder %s89, %s91
    %p98 = scmp.eq.s32.totalorder %s18, 1
    %p99 = por %p97, %p98
    %p100 = scmp.ne.s32.totalorder %s91, %s92
    %p101 = scmp.eq.s32.totalorder %s18, 0
    %p102 = por %p100, %p101
    %p103 = scmp.ne.s32.totalorder %s91, %s92
    %p104 = scmp.eq.s32.totalorder %s19, 1
    %p105 = por %p103, %p104
    %p107 = scmp.ne.s32.totalorder %s92, %s106
    %p108 = scmp.eq.s32.totalorder %s19, 0
    %p109 = por %p107, %p108
    %s111 = sadd.s32 %s110, 1
    %p114 = scmp.eq.s32.totalorder %s13, 1
    %p115 = scmp.ne.s32.totalorder %s110, %s112
    %p116 = scmp.eq.s32.totalorder %s13, 0
    %p117 = por %p115, %p116
    %p118 = scmp.ne.s32.totalorder %s110, %s112
    %p119 = scmp.eq.s32.totalorder %s18, 1
    %p120 = por %p118, %p119
    %p121 = scmp.ne.s32.totalorder %s112, %s113
    %p122 = scmp.eq.s32.totalorder %s18, 0
    %p123 = por %p121, %p122
    %p124 = scmp.ne.s32.totalorder %s112, %s113
    %p125 = scmp.eq.s32.totalorder %s19, 1
    %p126 = por %p124, %p125
    %p128 = scmp.ne.s32.totalorder %s113, %s127
    %p129 = scmp.eq.s32.totalorder %s19, 0
    %p130 = por %p128, %p129
    %s132 = sadd.s32 %s131, 1
    %p135 = scmp.eq.s32.totalorder %s13, 1
    %p136 = scmp.ne.s32.totalorder %s131, %s133
    %p137 = scmp.eq.s32.totalorder %s13, 0
    %p138 = por %p136, %p137
    %p139 = scmp.ne.s32.totalorder %s131, %s133
    %p140 = scmp.eq.s32.totalorder %s18, 1
    %p141 = por %p139, %p140
    %p142 = scmp.ne.s32.totalorder %s133, %s134
    %p143 = scmp.eq.s32.totalorder %s18, 0
    %p144 = por %p142, %p143
    %p145 = scmp.ne.s32.totalorder %s133, %s134
    %p146 = scmp.eq.s32.totalorder %s19, 1
    %p147 = por %p145, %p146
    %p149 = scmp.ne.s32.totalorder %s134, %s148
    %p150 = scmp.eq.s32.totalorder %s19, 0
    %p151 = por %p149, %p150
    %s153 = sadd.s32 %s152, 1
    %p156 = scmp.eq.s32.totalorder %s13, 1
    %p157 = scmp.ne.s32.totalorder %s152, %s154
    %p158 = scmp.eq.s32.totalorder %s13, 0
    %p159 = por %p157, %p158
    %p160 = scmp.ne.s32.totalorder %s152, %s154
    %p161 = scmp.eq.s32.totalorder %s18, 1
    %p162 = por %p160, %p161
    %p163 = scmp.ne.s32.totalorder %s154, %s155
    %p164 = scmp.eq.s32.totalorder %s18, 0
    %p165 = por %p163, %p164
    %p166 = scmp.ne.s32.totalorder %s154, %s155
    %p167 = scmp.eq.s32.totalorder %s19, 1
    %p168 = por %p166, %p167
    %p170 = scmp.ne.s32.totalorder %s155, %s169
    %p171 = scmp.eq.s32.totalorder %s19, 0
    %p172 = por %p170, %p171
    %s173 = ssub.s32 %s13, %s20
    %p174 = scmp.eq.s32.totalorder %s173, 0
    %s176 = sadd.s32 %s175, 1
    %s177 = scalar_select %p174, %s175, %s176
    %p180 = pneg %p174
    %p181 = scmp.eq.s32.totalorder %s13, 1
    %p182 = por %p180, %p181
    %p183 = scmp.ne.s32.totalorder %s175, %s178
    %p184 = scmp.eq.s32.totalorder %s13, 0
    %p185 = por %p183, %p184
    %p186 = scmp.ne.s32.totalorder %s175, %s178
    %p187 = scmp.eq.s32.totalorder %s18, 1
    %p188 = por %p186, %p187
    %p189 = scmp.ne.s32.totalorder %s178, %s179
    %p190 = scmp.eq.s32.totalorder %s18, 0
    %p191 = por %p189, %p190
    %p192 = scmp.ne.s32.totalorder %s178, %s179
    %p193 = scmp.eq.s32.totalorder %s19, 1
    %p194 = por %p192, %p193
    %p196 = scmp.ne.s32.totalorder %s179, %s195
    %p197 = scmp.eq.s32.totalorder %s19, 0
    %p198 = por %p196, %p197
    %p199 = scmp.le.s32.totalorder 1, %s13
    %p200 = scmp.lt.s32.totalorder %s13, 3
    %p201 = pnand %p199, %p200
    %p202 = pneg %p201
    // Predicated region
    $region9: #{discriminator_forward.1} parent=5 // pred_check
      _
    $region10: #{discriminator_forward.1} parent=5 // pred_check_branch
      %204 = sbr.rel (%p201) target = $region12
    $region11: #{discriminator_forward.1} parent=5 // pred_region
      %s205 = ssub.s32 %s13, 1
      // Predicated region
      $region13: #{discriminator_forward.1} parent=11 // pred_check
        %p206 = pneg %p60
      $region14: #{discriminator_forward.1} parent=11 // pred_check_branch
        %208 = sbr.rel (%p206) target = $region16
      $region15: #{discriminator_forward.1} parent=11 // pred_region
        _
      $region16: #{discriminator_forward.1} parent=11 // pred_fallthru
        _
      // Predicated region
      $region17: #{discriminator_forward.1} parent=11 // pred_check
        %p209 = pneg %p81
      $region18: #{discriminator_forward.1} parent=11 // pred_check_branch
        %211 = sbr.rel (%p209) target = $region20
      $region19: #{discriminator_forward.1} parent=11 // pred_region
        _
      $region20: #{discriminator_forward.1} parent=11 // pred_fallthru
        _
      // Predicated region
      $region21: #{discriminator_forward.1} parent=11 // pred_check
        %p212 = pneg %p102
      $region22: #{discriminator_forward.1} parent=11 // pred_check_branch
        %214 = sbr.rel (%p212) target = $region24
      $region23: #{discriminator_forward.1} parent=11 // pred_region
        _
      $region24: #{discriminator_forward.1} parent=11 // pred_fallthru
        _
      // Predicated region
      $region25: #{discriminator_forward.1} parent=11 // pred_check
        %p215 = pneg %p123
      $region26: #{discriminator_forward.1} parent=11 // pred_check_branch
        %217 = sbr.rel (%p215) target = $region28
      $region27: #{discriminator_forward.1} parent=11 // pred_region
        _
      $region28: #{discriminator_forward.1} parent=11 // pred_fallthru
        _
      // Predicated region
      $region29: #{discriminator_forward.1} parent=11 // pred_check
        %p218 = pneg %p144
      $region30: #{discriminator_forward.1} parent=11 // pred_check_branch
        %220 = sbr.rel (%p218) target = $region32
      $region31: #{discriminator_forward.1} parent=11 // pred_region
        _
      $region32: #{discriminator_forward.1} parent=11 // pred_fallthru
        _
      // Predicated region
      $region33: #{discriminator_forward.1} parent=11 // pred_check
        %p221 = pneg %p165
      $region34: #{discriminator_forward.1} parent=11 // pred_check_branch
        %223 = sbr.rel (%p221) target = $region36
      $region35: #{discriminator_forward.1} parent=11 // pred_region
        _
      $region36: #{discriminator_forward.1} parent=11 // pred_fallthru
        _
    $region12: #{discriminator_forward.1} parent=5 // pred_fallthru
      _
    %p224 = scmp.lt.s32.totalorder %s13, 2
    // Predicated region
    $region37: #{discriminator_forward.1} parent=5 // pred_check
      %p225 = pneg %p224
    $region38: #{discriminator_forward.1} parent=5 // pred_check_branch
      %227 = sbr.rel (%p225) target = $region40
    $region39: #{discriminator_forward.1} parent=5 // pred_region
      // Predicated region
      $region41: #{discriminator_forward.1} parent=39 // pred_check
        %p228 = pneg %p33
      $region42: #{discriminator_forward.1} parent=39 // pred_check_branch
        %230 = sbr.rel (%p228) target = $region44
      $region43: #{discriminator_forward.1} parent=39 // pred_region
        %s231 = smul.u32 32, %s13
        %p232 = scmp.lt.s32.totalorder %s231, 63
        %s233 = scalar_select %p232, %s231, 63
        %s234 = smul.addr %s233, 7
        %s235 = smul.addr %s234, 8
        %s236 = scalar_lea.vmem %s0, %s235
        %s237 = smul.u32 32, %s13
      $region44: #{discriminator_forward.1} parent=39 // pred_fallthru
        _
    $region40: #{discriminator_forward.1} parent=5 // pred_fallthru
      _
    %p238 = scmp.le.s32.totalorder 1, %s13
    %p239 = scmp.lt.s32.totalorder %s13, 3
    %p240 = pnand %p238, %p239
    %p241 = pneg %p240
    // Predicated region
    $region45: #{discriminator_forward.1} parent=5 // pred_check
      _
    $region46: #{discriminator_forward.1} parent=5 // pred_check_branch
      %243 = sbr.rel (%p240) target = $region48
    $region47: #{discriminator_forward.1} parent=5 // pred_region
      %s244 = ssub.s32 %s13, 1
      %s245 = smul.u32 32, %s18
      %p246 = scmp.lt.s32.totalorder %s245, 63
      %s247 = scalar_select %p246, %s245, 63
      %s248 = smul.addr %s247, 7
      %s249 = smul.addr %s248, 8
      %s250 = scalar_lea.vmem %s0, %s249
      %p251 = pneg %p39
      %p252 = pneg %p36
      %p253 = pneg %p60
      %p254 = pneg %p57
      %p255 = pneg %p81
      %p256 = pneg %p78
      %p257 = pneg %p102
      %p258 = pneg %p99
      %p259 = pneg %p123
      %p260 = pneg %p120
      %p261 = pneg %p144
      %p262 = pneg %p141
      %p263 = pneg %p165
      %p264 = pneg %p162
      %p265 = pneg %p191
      %p266 = pneg %p188
      %p267 = scmp.lt.s32.totalorder %s18, 1
      %s268 = scalar_select %p267, %s18, 1
      %s269 = smul.addr %s268, 2
      %s270 = smul.addr %s269, 8
      %s271 = scalar_lea.vmem %s7, %s270
      %s272 = smul.u32 32, %s18
      %p273 = scmp.lt.s32.totalorder %s272, 63
      %s274 = scalar_select %p273, %s272, 63
      %s275 = smul.addr %s274, 7
      %s276 = smul.addr %s275, 8
      %s277 = scalar_lea.vmem %s0, %s276
      %s278 = smul.u32 32, %s18
      %p279 = scmp.lt.s32.totalorder %s18, 1
      %s280 = scalar_select %p279, %s18, 1
      %s281 = smul.addr %s280, 2
      %s282 = smul.addr %s281, 8
      %s283 = scalar_lea.vmem %s7, %s282
      %v286 = vld [vmem:[%s277] sm:$0xff]
      %v287 = vld [vmem:[%s277 + $0x8] sm:$0xff]
      %v288 = vld [vmem:[%s277 + $0x10] sm:$0xff]
      %v289 = vld [vmem:[%s277 + $0x18] sm:$0xff]
      %v290 = vld [vmem:[%s277 + $0x20] sm:$0xff]
      %v291 = vld [vmem:[%s277 + $0x28] sm:$0xff]
      %v292 = vld [vmem:[%s277 + $0x30] sm:$0xff]
      %v293 = vld [vmem:[%s277 + $0x38] sm:$0xff]
      %v294 = vld [vmem:[%s277 + $0x40] sm:$0xff]
      %v295 = vld [vmem:[%s277 + $0x48] sm:$0xff]
      %v296 = vld [vmem:[%s277 + $0x50] sm:$0xff]
      %v297 = vld [vmem:[%s277 + $0x58] sm:$0xff]
      %v298 = vld [vmem:[%s277 + $0x60] sm:$0xff]
      %v299 = vld [vmem:[%s277 + $0x68] sm:$0xff]
      %v300 = vld [vmem:[%s277 + $0x70] sm:$0xff]
      %v301 = vld [vmem:[%s277 + $0x78] sm:$0xff]
      %v302 = vld [vmem:[%s277 + $0x80] sm:$0xff]
      %v303 = vld [vmem:[%s277 + $0x88] sm:$0xff]
      %v304 = vld [vmem:[%s277 + $0x90] sm:$0xff]
      %v305 = vld [vmem:[%s277 + $0x98] sm:$0xff]
      %v306 = vld [vmem:[%s277 + $0xa0] sm:$0xff]
      %v307 = vld [vmem:[%s277 + $0xa8] sm:$0xff]
      %v308 = vld [vmem:[%s277 + $0xb0] sm:$0xff]
      %v309 = vld [vmem:[%s277 + $0xb8] sm:$0xff]
      %v310 = vld [vmem:[%s277 + $0xc0] sm:$0xff]
      %v311 = vld [vmem:[%s277 + $0xc8] sm:$0xff]
      %v312 = vld [vmem:[%s277 + $0xd0] sm:$0xff]
      %v313 = vld [vmem:[%s277 + $0xd8] sm:$0xff]
      %v314 = vld [vmem:[%s277 + $0xe0] sm:$0xff]
      %v315 = vld [vmem:[%s277 + $0xe8] sm:$0xff]
      %v316 = vld [vmem:[%s277 + $0xf0] sm:$0xff]
      %v317 = vld [vmem:[%s277 + $0xf8] sm:$0xff]
      %v318 = vld [vmem:[%s277 + $0x100] sm:$0xff]
      %v319 = vld [vmem:[%s277 + $0x108] sm:$0xff]
      %v320 = vld [vmem:[%s277 + $0x110] sm:$0xff]
      %v321 = vld [vmem:[%s277 + $0x118] sm:$0xff]
      %v322 = vld [vmem:[%s277 + $0x120] sm:$0xff]
      %v323 = vld [vmem:[%s277 + $0x128] sm:$0xff]
      %v324 = vld [vmem:[%s277 + $0x130] sm:$0xff]
      %v325 = vld [vmem:[%s277 + $0x138] sm:$0xff]
      %v326 = vld [vmem:[%s277 + $0x140] sm:$0xff]
      %v327 = vld [vmem:[%s277 + $0x148] sm:$0xff]
      %v328 = vld [vmem:[%s277 + $0x150] sm:$0xff]
      %v329 = vld [vmem:[%s277 + $0x158] sm:$0xff]
      %v330 = vld [vmem:[%s277 + $0x160] sm:$0xff]
      %v331 = vld [vmem:[%s277 + $0x168] sm:$0xff]
      %v332 = vld [vmem:[%s277 + $0x170] sm:$0xff]
      %v333 = vld [vmem:[%s277 + $0x178] sm:$0xff]
      %v334 = vld [vmem:[%s277 + $0x180] sm:$0xff]
      %v335 = vld [vmem:[%s277 + $0x188] sm:$0xff]
      %v336 = vld [vmem:[%s277 + $0x190] sm:$0xff]
      %v337 = vld [vmem:[%s277 + $0x198] sm:$0xff]
      %v338 = vld [vmem:[%s277 + $0x1a0] sm:$0xff]
      %v339 = vld [vmem:[%s277 + $0x1a8] sm:$0xff]
      %v340 = vld [vmem:[%s277 + $0x1b0] sm:$0xff]
      %v341 = vld [vmem:[%s277 + $0x1b8] sm:$0xff]
      %v342 = vld [vmem:[%s277 + $0x1c0] sm:$0xff]
      %v343 = vld [vmem:[%s277 + $0x1c8] sm:$0xff]
      %v344 = vld [vmem:[%s277 + $0x1d0] sm:$0xff]
      %v345 = vld [vmem:[%s277 + $0x1d8] sm:$0xff]
      %v346 = vld [vmem:[%s277 + $0x1e0] sm:$0xff]
      %v347 = vld [vmem:[%s277 + $0x1e8] sm:$0xff]
      %v348 = vld [vmem:[%s277 + $0x1f0] sm:$0xff]
      %v349 = vld [vmem:[%s277 + $0x1f8] sm:$0xff]
      %v350 = vld [vmem:[%s277 + $0x200] sm:$0xff]
      %v351 = vld [vmem:[%s277 + $0x208] sm:$0xff]
      %v352 = vld [vmem:[%s277 + $0x210] sm:$0xff]
      %v353 = vld [vmem:[%s277 + $0x218] sm:$0xff]
      %v354 = vld [vmem:[%s277 + $0x220] sm:$0xff]
      %v355 = vld [vmem:[%s277 + $0x228] sm:$0xff]
      %v356 = vld [vmem:[%s277 + $0x230] sm:$0xff]
      %v357 = vld [vmem:[%s277 + $0x238] sm:$0xff]
      %v358 = vld [vmem:[%s277 + $0x240] sm:$0xff]
      %v359 = vld [vmem:[%s277 + $0x248] sm:$0xff]
      %v360 = vld [vmem:[%s277 + $0x250] sm:$0xff]
      %v361 = vld [vmem:[%s277 + $0x258] sm:$0xff]
      %v362 = vld [vmem:[%s277 + $0x260] sm:$0xff]
      %v363 = vld [vmem:[%s277 + $0x268] sm:$0xff]
      %v364 = vld [vmem:[%s277 + $0x270] sm:$0xff]
      %v365 = vld [vmem:[%s277 + $0x278] sm:$0xff]
      %v366 = vld [vmem:[%s277 + $0x280] sm:$0xff]
      %v367 = vld [vmem:[%s277 + $0x288] sm:$0xff]
      %v368 = vld [vmem:[%s277 + $0x290] sm:$0xff]
      %v369 = vld [vmem:[%s277 + $0x298] sm:$0xff]
      %v370 = vld [vmem:[%s277 + $0x2a0] sm:$0xff]
      %v371 = vld [vmem:[%s277 + $0x2a8] sm:$0xff]
      %v372 = vld [vmem:[%s277 + $0x2b0] sm:$0xff]
      %v373 = vld [vmem:[%s277 + $0x2b8] sm:$0xff]
      %v374 = vld [vmem:[%s277 + $0x2c0] sm:$0xff]
      %v375 = vld [vmem:[%s277 + $0x2c8] sm:$0xff]
      %v376 = vld [vmem:[%s277 + $0x2d0] sm:$0xff]
      %v377 = vld [vmem:[%s277 + $0x2d8] sm:$0xff]
      %v378 = vld [vmem:[%s277 + $0x2e0] sm:$0xff]
      %v379 = vld [vmem:[%s277 + $0x2e8] sm:$0xff]
      %v380 = vld [vmem:[%s277 + $0x2f0] sm:$0xff]
      %v381 = vld [vmem:[%s277 + $0x2f8] sm:$0xff]
      %v382 = vld [vmem:[%s277 + $0x300] sm:$0xff]
      %v383 = vld [vmem:[%s277 + $0x308] sm:$0xff]
      %v384 = vld [vmem:[%s277 + $0x310] sm:$0xff]
      %v385 = vld [vmem:[%s277 + $0x318] sm:$0xff]
      %v386 = vld [vmem:[%s277 + $0x320] sm:$0xff]
      %v387 = vld [vmem:[%s277 + $0x328] sm:$0xff]
      %v388 = vld [vmem:[%s277 + $0x330] sm:$0xff]
      %v389 = vld [vmem:[%s277 + $0x338] sm:$0xff]
      %v390 = vld [vmem:[%s277 + $0x340] sm:$0xff]
      %v391 = vld [vmem:[%s277 + $0x348] sm:$0xff]
      %v392 = vld [vmem:[%s277 + $0x350] sm:$0xff]
      %v393 = vld [vmem:[%s277 + $0x358] sm:$0xff]
      %v394 = vld [vmem:[%s277 + $0x360] sm:$0xff]
      %v395 = vld [vmem:[%s277 + $0x368] sm:$0xff]
      %v396 = vld [vmem:[%s277 + $0x370] sm:$0xff]
      %v397 = vld [vmem:[%s277 + $0x378] sm:$0xff]
      %v398 = vld [vmem:[%s277 + $0x380] sm:$0xff]
      %v399 = vld [vmem:[%s277 + $0x388] sm:$0xff]
      %v400 = vld [vmem:[%s277 + $0x390] sm:$0xff]
      %v401 = vld [vmem:[%s277 + $0x398] sm:$0xff]
      %v402 = vld [vmem:[%s277 + $0x3a0] sm:$0xff]
      %v403 = vld [vmem:[%s277 + $0x3a8] sm:$0xff]
      %v404 = vld [vmem:[%s277 + $0x3b0] sm:$0xff]
      %v405 = vld [vmem:[%s277 + $0x3b8] sm:$0xff]
      %v406 = vld [vmem:[%s277 + $0x3c0] sm:$0xff]
      %v407 = vld [vmem:[%s277 + $0x3c8] sm:$0xff]
      %v408 = vld [vmem:[%s277 + $0x3d0] sm:$0xff]
      %v409 = vld [vmem:[%s277 + $0x3d8] sm:$0xff]
      %v410 = vld [vmem:[%s277 + $0x3e0] sm:$0xff]
      %v411 = vld [vmem:[%s277 + $0x3e8] sm:$0xff]
      %v412 = vld [vmem:[%s277 + $0x3f0] sm:$0xff]
      %v413 = vld [vmem:[%s277 + $0x3f8] sm:$0xff]
      %v414 = vld [vmem:[%s277 + $0x400] sm:$0xff]
      %v415 = vld [vmem:[%s277 + $0x408] sm:$0xff]
      %v416 = vld [vmem:[%s277 + $0x410] sm:$0xff]
      %v417 = vld [vmem:[%s277 + $0x418] sm:$0xff]
      %v418 = vld [vmem:[%s277 + $0x420] sm:$0xff]
      %v419 = vld [vmem:[%s277 + $0x428] sm:$0xff]
      %v420 = vld [vmem:[%s277 + $0x430] sm:$0xff]
      %v421 = vld [vmem:[%s277 + $0x438] sm:$0xff]
      %v422 = vld [vmem:[%s277 + $0x440] sm:$0xff]
      %v423 = vld [vmem:[%s277 + $0x448] sm:$0xff]
      %v424 = vld [vmem:[%s277 + $0x450] sm:$0xff]
      %v425 = vld [vmem:[%s277 + $0x458] sm:$0xff]
      %v426 = vld [vmem:[%s277 + $0x460] sm:$0xff]
      %v427 = vld [vmem:[%s277 + $0x468] sm:$0xff]
      %v428 = vld [vmem:[%s277 + $0x470] sm:$0xff]
      %v429 = vld [vmem:[%s277 + $0x478] sm:$0xff]
      %v430 = vld [vmem:[%s277 + $0x480] sm:$0xff]
      %v431 = vld [vmem:[%s277 + $0x488] sm:$0xff]
      %v432 = vld [vmem:[%s277 + $0x490] sm:$0xff]
      %v433 = vld [vmem:[%s277 + $0x498] sm:$0xff]
      %v434 = vld [vmem:[%s277 + $0x4a0] sm:$0xff]
      %v435 = vld [vmem:[%s277 + $0x4a8] sm:$0xff]
      %v436 = vld [vmem:[%s277 + $0x4b0] sm:$0xff]
      %v437 = vld [vmem:[%s277 + $0x4b8] sm:$0xff]
      %v438 = vld [vmem:[%s277 + $0x4c0] sm:$0xff]
      %v439 = vld [vmem:[%s277 + $0x4c8] sm:$0xff]
      %v440 = vld [vmem:[%s277 + $0x4d0] sm:$0xff]
      %v441 = vld [vmem:[%s277 + $0x4d8] sm:$0xff]
      %v442 = vld [vmem:[%s277 + $0x4e0] sm:$0xff]
      %v443 = vld [vmem:[%s277 + $0x4e8] sm:$0xff]
      %v444 = vld [vmem:[%s277 + $0x4f0] sm:$0xff]
      %v445 = vld [vmem:[%s277 + $0x4f8] sm:$0xff]
      %v446 = vld [vmem:[%s277 + $0x500] sm:$0xff]
      %v447 = vld [vmem:[%s277 + $0x508] sm:$0xff]
      %v448 = vld [vmem:[%s277 + $0x510] sm:$0xff]
      %v449 = vld [vmem:[%s277 + $0x518] sm:$0xff]
      %v450 = vld [vmem:[%s277 + $0x520] sm:$0xff]
      %v451 = vld [vmem:[%s277 + $0x528] sm:$0xff]
      %v452 = vld [vmem:[%s277 + $0x530] sm:$0xff]
      %v453 = vld [vmem:[%s277 + $0x538] sm:$0xff]
      %v454 = vld [vmem:[%s277 + $0x540] sm:$0xff]
      %v455 = vld [vmem:[%s277 + $0x548] sm:$0xff]
      %v456 = vld [vmem:[%s277 + $0x550] sm:$0xff]
      %v457 = vld [vmem:[%s277 + $0x558] sm:$0xff]
      %v458 = vld [vmem:[%s277 + $0x560] sm:$0xff]
      %v459 = vld [vmem:[%s277 + $0x568] sm:$0xff]
      %v460 = vld [vmem:[%s277 + $0x570] sm:$0xff]
      %v461 = vld [vmem:[%s277 + $0x578] sm:$0xff]
      %v462 = vld [vmem:[%s277 + $0x580] sm:$0xff]
      %v463 = vld [vmem:[%s277 + $0x588] sm:$0xff]
      %v464 = vld [vmem:[%s277 + $0x590] sm:$0xff]
      %v465 = vld [vmem:[%s277 + $0x598] sm:$0xff]
      %v466 = vld [vmem:[%s277 + $0x5a0] sm:$0xff]
      %v467 = vld [vmem:[%s277 + $0x5a8] sm:$0xff]
      %v468 = vld [vmem:[%s277 + $0x5b0] sm:$0xff]
      %v469 = vld [vmem:[%s277 + $0x5b8] sm:$0xff]
      %v470 = vld [vmem:[%s277 + $0x5c0] sm:$0xff]
      %v471 = vld [vmem:[%s277 + $0x5c8] sm:$0xff]
      %v472 = vld [vmem:[%s277 + $0x5d0] sm:$0xff]
      %v473 = vld [vmem:[%s277 + $0x5d8] sm:$0xff]
      %v474 = vld [vmem:[%s277 + $0x5e0] sm:$0xff]
      %v475 = vld [vmem:[%s277 + $0x5e8] sm:$0xff]
      %v476 = vld [vmem:[%s277 + $0x5f0] sm:$0xff]
      %v477 = vld [vmem:[%s277 + $0x5f8] sm:$0xff]
      %v478 = vld [vmem:[%s277 + $0x600] sm:$0xff]
      %v479 = vld [vmem:[%s277 + $0x608] sm:$0xff]
      %v480 = vld [vmem:[%s277 + $0x610] sm:$0xff]
      %v481 = vld [vmem:[%s277 + $0x618] sm:$0xff]
      %v482 = vld [vmem:[%s277 + $0x620] sm:$0xff]
      %v483 = vld [vmem:[%s277 + $0x628] sm:$0xff]
      %v484 = vld [vmem:[%s277 + $0x630] sm:$0xff]
      %v485 = vld [vmem:[%s277 + $0x638] sm:$0xff]
      %v486 = vld [vmem:[%s277 + $0x640] sm:$0xff]
      %v487 = vld [vmem:[%s277 + $0x648] sm:$0xff]
      %v488 = vld [vmem:[%s277 + $0x650] sm:$0xff]
      %v489 = vld [vmem:[%s277 + $0x658] sm:$0xff]
      %v490 = vld [vmem:[%s277 + $0x660] sm:$0xff]
      %v491 = vld [vmem:[%s277 + $0x668] sm:$0xff]
      %v492 = vld [vmem:[%s277 + $0x670] sm:$0xff]
      %v493 = vld [vmem:[%s277 + $0x678] sm:$0xff]
      %v494 = vld [vmem:[%s277 + $0x680] sm:$0xff]
      %v495 = vld [vmem:[%s277 + $0x688] sm:$0xff]
      %v496 = vld [vmem:[%s277 + $0x690] sm:$0xff]
      %v497 = vld [vmem:[%s277 + $0x698] sm:$0xff]
      %v498 = vld [vmem:[%s277 + $0x6a0] sm:$0xff]
      %v499 = vld [vmem:[%s277 + $0x6a8] sm:$0xff]
      %v500 = vld [vmem:[%s277 + $0x6b0] sm:$0xff]
      %v501 = vld [vmem:[%s277 + $0x6b8] sm:$0xff]
      %v502 = vld [vmem:[%s277 + $0x6c0] sm:$0xff]
      %v503 = vld [vmem:[%s277 + $0x6c8] sm:$0xff]
      %v504 = vld [vmem:[%s277 + $0x6d0] sm:$0xff]
      %v505 = vld [vmem:[%s277 + $0x6d8] sm:$0xff]
      %v506 = vld [vmem:[%s277 + $0x6e0] sm:$0xff]
      %v507 = vld [vmem:[%s277 + $0x6e8] sm:$0xff]
      %v508 = vld [vmem:[%s277 + $0x6f0] sm:$0xff]
      %v509 = vld [vmem:[%s277 + $0x6f8] sm:$0xff]
      %v510 = vpack.c.bf16 %v293, %v286
      %v511 = vpack.c.bf16 %v294, %v287
      %v512 = vpack.c.bf16 %v295, %v288
      %v513 = vpack.c.bf16 %v296, %v289
      %v514 = vpack.c.bf16 %v297, %v290
      %v515 = vpack.c.bf16 %v298, %v291
      %v516 = vpack.c.bf16 %v299, %v292
      %v517 = vpack.c.bf16 %v307, %v300
      %v518 = vpack.c.bf16 %v308, %v301
      %v519 = vpack.c.bf16 %v309, %v302
      %v520 = vpack.c.bf16 %v310, %v303
      %v521 = vpack.c.bf16 %v311, %v304
      %v522 = vpack.c.bf16 %v312, %v305
      %v523 = vpack.c.bf16 %v313, %v306
      %v524 = vpack.c.bf16 %v321, %v314
      %v525 = vpack.c.bf16 %v322, %v315
      %v526 = vpack.c.bf16 %v323, %v316
      %v527 = vpack.c.bf16 %v324, %v317
      %v528 = vpack.c.bf16 %v325, %v318
      %v529 = vpack.c.bf16 %v326, %v319
      %v530 = vpack.c.bf16 %v327, %v320
      %v531 = vpack.c.bf16 %v335, %v328
      %v532 = vpack.c.bf16 %v336, %v329
      %v533 = vpack.c.bf16 %v337, %v330
      %v534 = vpack.c.bf16 %v338, %v331
      %v535 = vpack.c.bf16 %v339, %v332
      %v536 = vpack.c.bf16 %v340, %v333
      %v537 = vpack.c.bf16 %v341, %v334
      %v538 = vpack.c.bf16 %v349, %v342
      %v539 = vpack.c.bf16 %v350, %v343
      %v540 = vpack.c.bf16 %v351, %v344
      %v541 = vpack.c.bf16 %v352, %v345
      %v542 = vpack.c.bf16 %v353, %v346
      %v543 = vpack.c.bf16 %v354, %v347
      %v544 = vpack.c.bf16 %v355, %v348
      %v545 = vpack.c.bf16 %v363, %v356
      %v546 = vpack.c.bf16 %v364, %v357
      %v547 = vpack.c.bf16 %v365, %v358
      %v548 = vpack.c.bf16 %v366, %v359
      %v549 = vpack.c.bf16 %v367, %v360
      %v550 = vpack.c.bf16 %v368, %v361
      %v551 = vpack.c.bf16 %v369, %v362
      %v552 = vpack.c.bf16 %v377, %v370
      %v553 = vpack.c.bf16 %v378, %v371
      %v554 = vpack.c.bf16 %v379, %v372
      %v555 = vpack.c.bf16 %v380, %v373
      %v556 = vpack.c.bf16 %v381, %v374
      %v557 = vpack.c.bf16 %v382, %v375
      %v558 = vpack.c.bf16 %v383, %v376
      %v559 = vpack.c.bf16 %v391, %v384
      %v560 = vpack.c.bf16 %v392, %v385
      %v561 = vpack.c.bf16 %v393, %v386
      %v562 = vpack.c.bf16 %v394, %v387
      %v563 = vpack.c.bf16 %v395, %v388
      %v564 = vpack.c.bf16 %v396, %v389
      %v565 = vpack.c.bf16 %v397, %v390
      %v566 = vpack.c.bf16 %v405, %v398
      %v567 = vpack.c.bf16 %v406, %v399
      %v568 = vpack.c.bf16 %v407, %v400
      %v569 = vpack.c.bf16 %v408, %v401
      %v570 = vpack.c.bf16 %v409, %v402
      %v571 = vpack.c.bf16 %v410, %v403
      %v572 = vpack.c.bf16 %v411, %v404
      %v573 = vpack.c.bf16 %v419, %v412
      %v574 = vpack.c.bf16 %v420, %v413
      %v575 = vpack.c.bf16 %v421, %v414
      %v576 = vpack.c.bf16 %v422, %v415
      %v577 = vpack.c.bf16 %v423, %v416
      %v578 = vpack.c.bf16 %v424, %v417
      %v579 = vpack.c.bf16 %v425, %v418
      %v580 = vpack.c.bf16 %v433, %v426
      %v581 = vpack.c.bf16 %v434, %v427
      %v582 = vpack.c.bf16 %v435, %v428
      %v583 = vpack.c.bf16 %v436, %v429
      %v584 = vpack.c.bf16 %v437, %v430
      %v585 = vpack.c.bf16 %v438, %v431
      %v586 = vpack.c.bf16 %v439, %v432
      %v587 = vpack.c.bf16 %v447, %v440
      %v588 = vpack.c.bf16 %v448, %v441
      %v589 = vpack.c.bf16 %v449, %v442
      %v590 = vpack.c.bf16 %v450, %v443
      %v591 = vpack.c.bf16 %v451, %v444
      %v592 = vpack.c.bf16 %v452, %v445
      %v593 = vpack.c.bf16 %v453, %v446
      %v594 = vpack.c.bf16 %v461, %v454
      %v595 = vpack.c.bf16 %v462, %v455
      %v596 = vpack.c.bf16 %v463, %v456
      %v597 = vpack.c.bf16 %v464, %v457
      %v598 = vpack.c.bf16 %v465, %v458
      %v599 = vpack.c.bf16 %v466, %v459
      %v600 = vpack.c.bf16 %v467, %v460
      %v601 = vpack.c.bf16 %v475, %v468
      %v602 = vpack.c.bf16 %v476, %v469
      %v603 = vpack.c.bf16 %v477, %v470
      %v604 = vpack.c.bf16 %v478, %v471
      %v605 = vpack.c.bf16 %v479, %v472
      %v606 = vpack.c.bf16 %v480, %v473
      %v607 = vpack.c.bf16 %v481, %v474
      %v608 = vpack.c.bf16 %v489, %v482
      %v609 = vpack.c.bf16 %v490, %v483
      %v610 = vpack.c.bf16 %v491, %v484
      %v611 = vpack.c.bf16 %v492, %v485
      %v612 = vpack.c.bf16 %v493, %v486
      %v613 = vpack.c.bf16 %v494, %v487
      %v614 = vpack.c.bf16 %v495, %v488
      %v615 = vpack.c.bf16 %v503, %v496
      %v616 = vpack.c.bf16 %v504, %v497
      %v617 = vpack.c.bf16 %v505, %v498
      %v618 = vpack.c.bf16 %v506, %v499
      %v619 = vpack.c.bf16 %v507, %v500
      %v620 = vpack.c.bf16 %v508, %v501
      %v621 = vpack.c.bf16 %v509, %v502
      %v622 = vld [vmem:[%s1] sm:$0xff]
      %v623 = vld [vmem:[%s1 + $0x8] sm:$0xff]
      %v624 = vld [vmem:[%s1 + $0x10] sm:$0xff]
      %v625 = vld [vmem:[%s1 + $0x18] sm:$0xff]
      %v626 = vld [vmem:[%s1 + $0x20] sm:$0xff]
      %v627 = vld [vmem:[%s1 + $0x28] sm:$0xff]
      %v628 = vld [vmem:[%s1 + $0x30] sm:$0xff]
      %v629 = vld [vmem:[%s1 + $0x38] sm:$0xff]
      %v630 = vld [vmem:[%s1 + $0x40] sm:$0xff]
      %v631 = vld [vmem:[%s1 + $0x48] sm:$0xff]
      %v632 = vld [vmem:[%s1 + $0x50] sm:$0xff]
      %v633 = vld [vmem:[%s1 + $0x58] sm:$0xff]
      %v634 = vld [vmem:[%s1 + $0x60] sm:$0xff]
      %v635 = vld [vmem:[%s1 + $0x68] sm:$0xff]
      %v636 = vld [vmem:[%s1 + $0x70] sm:$0xff]
      %v637 = vld [vmem:[%s1 + $0x78] sm:$0xff]
      %v638 = vld [vmem:[%s1 + $0x80] sm:$0xff]
      %v639 = vld [vmem:[%s1 + $0x88] sm:$0xff]
      %v640 = vld [vmem:[%s1 + $0x90] sm:$0xff]
      %v641 = vld [vmem:[%s1 + $0x98] sm:$0xff]
      %v642 = vld [vmem:[%s1 + $0xa0] sm:$0xff]
      %v643 = vld [vmem:[%s1 + $0xa8] sm:$0xff]
      %v644 = vld [vmem:[%s1 + $0xb0] sm:$0xff]
      %v645 = vld [vmem:[%s1 + $0xb8] sm:$0xff]
      %v646 = vld [vmem:[%s1 + $0xc0] sm:$0xff]
      %v647 = vld [vmem:[%s1 + $0xc8] sm:$0xff]
      %v648 = vld [vmem:[%s1 + $0xd0] sm:$0xff]
      %v649 = vld [vmem:[%s1 + $0xd8] sm:$0xff]
      %v650 = vld [vmem:[%s1 + $0xe0] sm:$0xff]
      %v651 = vld [vmem:[%s1 + $0xe8] sm:$0xff]
      %v652 = vld [vmem:[%s1 + $0xf0] sm:$0xff]
      %v653 = vld [vmem:[%s1 + $0xf8] sm:$0xff]
      %v654 = vld [vmem:[%s1 + $0x100] sm:$0xff]
      %v655 = vld [vmem:[%s1 + $0x108] sm:$0xff]
      %v656 = vld [vmem:[%s1 + $0x110] sm:$0xff]
      %v657 = vld [vmem:[%s1 + $0x118] sm:$0xff]
      %v658 = vld [vmem:[%s1 + $0x120] sm:$0xff]
      %v659 = vld [vmem:[%s1 + $0x128] sm:$0xff]
      %v660 = vld [vmem:[%s1 + $0x130] sm:$0xff]
      %v661 = vld [vmem:[%s1 + $0x138] sm:$0xff]
      %v662 = vld [vmem:[%s1 + $0x140] sm:$0xff]
      %v663 = vld [vmem:[%s1 + $0x148] sm:$0xff]
      %v664 = vld [vmem:[%s1 + $0x150] sm:$0xff]
      %v665 = vld [vmem:[%s1 + $0x158] sm:$0xff]
      %v666 = vld [vmem:[%s1 + $0x160] sm:$0xff]
      %v667 = vld [vmem:[%s1 + $0x168] sm:$0xff]
      %v668 = vld [vmem:[%s1 + $0x170] sm:$0xff]
      %v669 = vld [vmem:[%s1 + $0x178] sm:$0xff]
      %v670 = vld [vmem:[%s1 + $0x180] sm:$0xff]
      %v671 = vld [vmem:[%s1 + $0x188] sm:$0xff]
      %v672 = vld [vmem:[%s1 + $0x190] sm:$0xff]
      %v673 = vld [vmem:[%s1 + $0x198] sm:$0xff]
      %v674 = vld [vmem:[%s1 + $0x1a0] sm:$0xff]
      %v675 = vld [vmem:[%s1 + $0x1a8] sm:$0xff]
      %v676 = vld [vmem:[%s1 + $0x1b0] sm:$0xff]
      %v677 = vld [vmem:[%s1 + $0x1b8] sm:$0xff]
      %v678 = vld [vmem:[%s1 + $0x1c0] sm:$0xff]
      %v679 = vld [vmem:[%s1 + $0x1c8] sm:$0xff]
      %v680 = vld [vmem:[%s1 + $0x1d0] sm:$0xff]
      %v681 = vld [vmem:[%s1 + $0x1d8] sm:$0xff]
      %v682 = vld [vmem:[%s1 + $0x1e0] sm:$0xff]
      %v683 = vld [vmem:[%s1 + $0x1e8] sm:$0xff]
      %v684 = vld [vmem:[%s1 + $0x1f0] sm:$0xff]
      %v685 = vld [vmem:[%s1 + $0x1f8] sm:$0xff]
      %v686 = vld [vmem:[%s1 + $0x200] sm:$0xff]
      %v687 = vld [vmem:[%s1 + $0x208] sm:$0xff]
      %v688 = vld [vmem:[%s1 + $0x210] sm:$0xff]
      %v689 = vld [vmem:[%s1 + $0x218] sm:$0xff]
      %v690 = vld [vmem:[%s1 + $0x220] sm:$0xff]
      %v691 = vld [vmem:[%s1 + $0x228] sm:$0xff]
      %v692 = vld [vmem:[%s1 + $0x230] sm:$0xff]
      %v693 = vld [vmem:[%s1 + $0x238] sm:$0xff]
      %v694 = vld [vmem:[%s1 + $0x240] sm:$0xff]
      %v695 = vld [vmem:[%s1 + $0x248] sm:$0xff]
      %v696 = vld [vmem:[%s1 + $0x250] sm:$0xff]
      %v697 = vld [vmem:[%s1 + $0x258] sm:$0xff]
      %v698 = vld [vmem:[%s1 + $0x260] sm:$0xff]
      %v699 = vld [vmem:[%s1 + $0x268] sm:$0xff]
      %v700 = vld [vmem:[%s1 + $0x270] sm:$0xff]
      %v701 = vld [vmem:[%s1 + $0x278] sm:$0xff]
      %v702 = vld [vmem:[%s1 + $0x280] sm:$0xff]
      %v703 = vld [vmem:[%s1 + $0x288] sm:$0xff]
      %v704 = vld [vmem:[%s1 + $0x290] sm:$0xff]
      %v705 = vld [vmem:[%s1 + $0x298] sm:$0xff]
      %v706 = vld [vmem:[%s1 + $0x2a0] sm:$0xff]
      %v707 = vld [vmem:[%s1 + $0x2a8] sm:$0xff]
      %v708 = vld [vmem:[%s1 + $0x2b0] sm:$0xff]
      %v709 = vld [vmem:[%s1 + $0x2b8] sm:$0xff]
      %v710 = vld [vmem:[%s1 + $0x2c0] sm:$0xff]
      %v711 = vld [vmem:[%s1 + $0x2c8] sm:$0xff]
      %v712 = vld [vmem:[%s1 + $0x2d0] sm:$0xff]
      %v713 = vld [vmem:[%s1 + $0x2d8] sm:$0xff]
      %v714 = vld [vmem:[%s1 + $0x2e0] sm:$0xff]
      %v715 = vld [vmem:[%s1 + $0x2e8] sm:$0xff]
      %v716 = vld [vmem:[%s1 + $0x2f0] sm:$0xff]
      %v717 = vld [vmem:[%s1 + $0x2f8] sm:$0xff]
      %v718 = vld [vmem:[%s1 + $0x300] sm:$0xff]
      %v719 = vld [vmem:[%s1 + $0x308] sm:$0xff]
      %v818 = vunpack.c.l.b16 %v622
      %v819 = vunpack.c.h.b16 %v622
      %v820 = vunpack.c.l.b16 %v623
      %v821 = vunpack.c.h.b16 %v623
      %v822 = vunpack.c.l.b16 %v624
      %v823 = vunpack.c.h.b16 %v624
      %v824 = vunpack.c.l.b16 %v625
      %v825 = vunpack.c.h.b16 %v625
      %v826 = vunpack.c.l.b16 %v626
      %v827 = vunpack.c.h.b16 %v626
      %v828 = vunpack.c.l.b16 %v627
      %v829 = vunpack.c.h.b16 %v627
      %v830 = vunpack.c.l.b16 %v628
      %v831 = vunpack.c.h.b16 %v628
      %v832 = vunpack.c.l.b16 %v629
      %v833 = vunpack.c.h.b16 %v629
      %v834 = vunpack.c.l.b16 %v630
      %v835 = vunpack.c.h.b16 %v630
      %v836 = vunpack.c.l.b16 %v631
      %v837 = vunpack.c.h.b16 %v631
      %v838 = vunpack.c.l.b16 %v632
      %v839 = vunpack.c.h.b16 %v632
      %v840 = vunpack.c.l.b16 %v633
      %v841 = vunpack.c.h.b16 %v633
      %v842 = vunpack.c.l.b16 %v634
      %v843 = vunpack.c.h.b16 %v634
      %v844 = vunpack.c.l.b16 %v635
      %v845 = vunpack.c.h.b16 %v635
      %v846 = vunpack.c.l.b16 %v636
      %v847 = vunpack.c.h.b16 %v636
      %v848 = vunpack.c.l.b16 %v637
      %v849 = vunpack.c.h.b16 %v637
      %v850 = vunpack.c.l.b16 %v638
      %v851 = vunpack.c.h.b16 %v638
      %v852 = vunpack.c.l.b16 %v639
      %v853 = vunpack.c.h.b16 %v639
      %v854 = vunpack.c.l.b16 %v640
      %v855 = vunpack.c.h.b16 %v640
      %v856 = vunpack.c.l.b16 %v641
      %v857 = vunpack.c.h.b16 %v641
      %v858 = vunpack.c.l.b16 %v642
      %v859 = vunpack.c.h.b16 %v642
      %v860 = vunpack.c.l.b16 %v643
      %v861 = vunpack.c.h.b16 %v643
      %v862 = vunpack.c.l.b16 %v644
      %v863 = vunpack.c.h.b16 %v644
      %v864 = vunpack.c.l.b16 %v645
      %v865 = vunpack.c.h.b16 %v645
      %v866 = vunpack.c.l.b16 %v646
      %v867 = vunpack.c.h.b16 %v646
      %v868 = vunpack.c.l.b16 %v647
      %v869 = vunpack.c.h.b16 %v647
      %v870 = vunpack.c.l.b16 %v648
      %v871 = vunpack.c.h.b16 %v648
      %v872 = vunpack.c.l.b16 %v649
      %v873 = vunpack.c.h.b16 %v649
      %v874 = vunpack.c.l.b16 %v650
      %v875 = vunpack.c.h.b16 %v650
      %v876 = vunpack.c.l.b16 %v651
      %v877 = vunpack.c.h.b16 %v651
      %v878 = vunpack.c.l.b16 %v652
      %v879 = vunpack.c.h.b16 %v652
      %v880 = vunpack.c.l.b16 %v653
      %v881 = vunpack.c.h.b16 %v653
      %v882 = vunpack.c.l.b16 %v654
      %v883 = vunpack.c.h.b16 %v654
      %v884 = vunpack.c.l.b16 %v655
      %v885 = vunpack.c.h.b16 %v655
      %v886 = vunpack.c.l.b16 %v656
      %v887 = vunpack.c.h.b16 %v656
      %v888 = vunpack.c.l.b16 %v657
      %v889 = vunpack.c.h.b16 %v657
      %v890 = vunpack.c.l.b16 %v658
      %v891 = vunpack.c.h.b16 %v658
      %v892 = vunpack.c.l.b16 %v659
      %v893 = vunpack.c.h.b16 %v659
      %v894 = vunpack.c.l.b16 %v660
      %v895 = vunpack.c.h.b16 %v660
      %v896 = vunpack.c.l.b16 %v661
      %v897 = vunpack.c.h.b16 %v661
      %v898 = vunpack.c.l.b16 %v662
      %v899 = vunpack.c.h.b16 %v662
      %v900 = vunpack.c.l.b16 %v663
      %v901 = vunpack.c.h.b16 %v663
      %v902 = vunpack.c.l.b16 %v664
      %v903 = vunpack.c.h.b16 %v664
      %v904 = vunpack.c.l.b16 %v665
      %v905 = vunpack.c.h.b16 %v665
      %v906 = vunpack.c.l.b16 %v666
      %v907 = vunpack.c.h.b16 %v666
      %v908 = vunpack.c.l.b16 %v667
      %v909 = vunpack.c.h.b16 %v667
      %v910 = vunpack.c.l.b16 %v668
      %v911 = vunpack.c.h.b16 %v668
      %v912 = vunpack.c.l.b16 %v669
      %v913 = vunpack.c.h.b16 %v669
      %v914 = vunpack.c.l.b16 %v670
      %v915 = vunpack.c.h.b16 %v670
      %v916 = vunpack.c.l.b16 %v671
      %v917 = vunpack.c.h.b16 %v671
      %v918 = vunpack.c.l.b16 %v672
      %v919 = vunpack.c.h.b16 %v672
      %v920 = vunpack.c.l.b16 %v673
      %v921 = vunpack.c.h.b16 %v673
      %v922 = vunpack.c.l.b16 %v674
      %v923 = vunpack.c.h.b16 %v674
      %v924 = vunpack.c.l.b16 %v675
      %v925 = vunpack.c.h.b16 %v675
      %v926 = vunpack.c.l.b16 %v676
      %v927 = vunpack.c.h.b16 %v676
      %v928 = vunpack.c.l.b16 %v677
      %v929 = vunpack.c.h.b16 %v677
      %v930 = vunpack.c.l.b16 %v678
      %v931 = vunpack.c.h.b16 %v678
      %v932 = vunpack.c.l.b16 %v679
      %v933 = vunpack.c.h.b16 %v679
      %v934 = vunpack.c.l.b16 %v680
      %v935 = vunpack.c.h.b16 %v680
      %v936 = vunpack.c.l.b16 %v681
      %v937 = vunpack.c.h.b16 %v681
      %v938 = vunpack.c.l.b16 %v682
      %v939 = vunpack.c.h.b16 %v682
      %v940 = vunpack.c.l.b16 %v683
      %v941 = vunpack.c.h.b16 %v683
      %v942 = vunpack.c.l.b16 %v684
      %v943 = vunpack.c.h.b16 %v684
      %v944 = vunpack.c.l.b16 %v685
      %v945 = vunpack.c.h.b16 %v685
      %v946 = vunpack.c.l.b16 %v686
      %v947 = vunpack.c.h.b16 %v686
      %v948 = vunpack.c.l.b16 %v687
      %v949 = vunpack.c.h.b16 %v687
      %v950 = vunpack.c.l.b16 %v688
      %v951 = vunpack.c.h.b16 %v688
      %v952 = vunpack.c.l.b16 %v689
      %v953 = vunpack.c.h.b16 %v689
      %v954 = vunpack.c.l.b16 %v690
      %v955 = vunpack.c.h.b16 %v690
      %v956 = vunpack.c.l.b16 %v691
      %v957 = vunpack.c.h.b16 %v691
      %v958 = vunpack.c.l.b16 %v692
      %v959 = vunpack.c.h.b16 %v692
      %v960 = vunpack.c.l.b16 %v693
      %v961 = vunpack.c.h.b16 %v693
      %v962 = vunpack.c.l.b16 %v694
      %v963 = vunpack.c.h.b16 %v694
      %v964 = vunpack.c.l.b16 %v695
      %v965 = vunpack.c.h.b16 %v695
      %v966 = vunpack.c.l.b16 %v696
      %v967 = vunpack.c.h.b16 %v696
      %v968 = vunpack.c.l.b16 %v697
      %v969 = vunpack.c.h.b16 %v697
      %v970 = vunpack.c.l.b16 %v698
      %v971 = vunpack.c.h.b16 %v698
      %v972 = vunpack.c.l.b16 %v699
      %v973 = vunpack.c.h.b16 %v699
      %v974 = vunpack.c.l.b16 %v700
      %v975 = vunpack.c.h.b16 %v700
      %v976 = vunpack.c.l.b16 %v701
      %v977 = vunpack.c.h.b16 %v701
      %v978 = vunpack.c.l.b16 %v702
      %v979 = vunpack.c.h.b16 %v702
      %v980 = vunpack.c.l.b16 %v703
      %v981 = vunpack.c.h.b16 %v703
      %v982 = vunpack.c.l.b16 %v704
      %v983 = vunpack.c.h.b16 %v704
      %v984 = vunpack.c.l.b16 %v705
      %v985 = vunpack.c.h.b16 %v705
      %v986 = vunpack.c.l.b16 %v706
      %v987 = vunpack.c.h.b16 %v706
      %v988 = vunpack.c.l.b16 %v707
      %v989 = vunpack.c.h.b16 %v707
      %v990 = vunpack.c.l.b16 %v708
      %v991 = vunpack.c.h.b16 %v708
      %v992 = vunpack.c.l.b16 %v709
      %v993 = vunpack.c.h.b16 %v709
      %v994 = vunpack.c.l.b16 %v710
      %v995 = vunpack.c.h.b16 %v710
      %v996 = vunpack.c.l.b16 %v711
      %v997 = vunpack.c.h.b16 %v711
      %v998 = vunpack.c.l.b16 %v712
      %v999 = vunpack.c.h.b16 %v712
      %v1000 = vunpack.c.l.b16 %v713
      %v1001 = vunpack.c.h.b16 %v713
      %v1002 = vunpack.c.l.b16 %v714
      %v1003 = vunpack.c.h.b16 %v714
      %v1004 = vunpack.c.l.b16 %v715
      %v1005 = vunpack.c.h.b16 %v715
      %v1006 = vunpack.c.l.b16 %v716
      %v1007 = vunpack.c.h.b16 %v716
      %v1008 = vunpack.c.l.b16 %v717
      %v1009 = vunpack.c.h.b16 %v717
      %v1010 = vunpack.c.l.b16 %v718
      %v1011 = vunpack.c.h.b16 %v718
      %v1012 = vunpack.c.l.b16 %v719
      %v1013 = vunpack.c.h.b16 %v719
      %v1014 = vpack.c.b16 %v820, %v818
      %v1015 = vpack.c.b16 %v821, %v819
      %v1016 = vpack.c.b16 %v824, %v822
      %v1017 = vpack.c.b16 %v825, %v823
      %v1018 = vpack.c.b16 %v828, %v826
      %v1019 = vpack.c.b16 %v829, %v827
      %v1020 = vpack.c.b16 %v832, %v830
      %v1021 = vpack.c.b16 %v833, %v831
      %v1022 = vpack.c.b16 %v836, %v834
      %v1023 = vpack.c.b16 %v837, %v835
      %v1024 = vpack.c.b16 %v840, %v838
      %v1025 = vpack.c.b16 %v841, %v839
      %v1026 = vpack.c.b16 %v844, %v842
      %v1027 = vpack.c.b16 %v845, %v843
      %v1028 = vpack.c.b16 %v848, %v846
      %v1029 = vpack.c.b16 %v849, %v847
      %v1030 = vpack.c.b16 %v852, %v850
      %v1031 = vpack.c.b16 %v853, %v851
      %v1032 = vpack.c.b16 %v856, %v854
      %v1033 = vpack.c.b16 %v857, %v855
      %v1034 = vpack.c.b16 %v860, %v858
      %v1035 = vpack.c.b16 %v861, %v859
      %v1036 = vpack.c.b16 %v864, %v862
      %v1037 = vpack.c.b16 %v865, %v863
      %v1038 = vpack.c.b16 %v868, %v866
      %v1039 = vpack.c.b16 %v869, %v867
      %v1040 = vpack.c.b16 %v872, %v870
      %v1041 = vpack.c.b16 %v873, %v871
      %v1042 = vpack.c.b16 %v876, %v874
      %v1043 = vpack.c.b16 %v877, %v875
      %v1044 = vpack.c.b16 %v880, %v878
      %v1045 = vpack.c.b16 %v881, %v879
      %v1046 = vpack.c.b16 %v884, %v882
      %v1047 = vpack.c.b16 %v885, %v883
      %v1048 = vpack.c.b16 %v888, %v886
      %v1049 = vpack.c.b16 %v889, %v887
      %v1050 = vpack.c.b16 %v892, %v890
      %v1051 = vpack.c.b16 %v893, %v891
      %v1052 = vpack.c.b16 %v896, %v894
      %v1053 = vpack.c.b16 %v897, %v895
      %v1054 = vpack.c.b16 %v900, %v898
      %v1055 = vpack.c.b16 %v901, %v899
      %v1056 = vpack.c.b16 %v904, %v902
      %v1057 = vpack.c.b16 %v905, %v903
      %v1058 = vpack.c.b16 %v908, %v906
      %v1059 = vpack.c.b16 %v909, %v907
      %v1060 = vpack.c.b16 %v912, %v910
      %v1061 = vpack.c.b16 %v913, %v911
      %v1062 = vpack.c.b16 %v916, %v914
      %v1063 = vpack.c.b16 %v917, %v915
      %v1064 = vpack.c.b16 %v920, %v918
      %v1065 = vpack.c.b16 %v921, %v919
      %v1066 = vpack.c.b16 %v924, %v922
      %v1067 = vpack.c.b16 %v925, %v923
      %v1068 = vpack.c.b16 %v928, %v926
      %v1069 = vpack.c.b16 %v929, %v927
      %v1070 = vpack.c.b16 %v932, %v930
      %v1071 = vpack.c.b16 %v933, %v931
      %v1072 = vpack.c.b16 %v936, %v934
      %v1073 = vpack.c.b16 %v937, %v935
      %v1074 = vpack.c.b16 %v940, %v938
      %v1075 = vpack.c.b16 %v941, %v939
      %v1076 = vpack.c.b16 %v944, %v942
      %v1077 = vpack.c.b16 %v945, %v943
      %v1078 = vpack.c.b16 %v948, %v946
      %v1079 = vpack.c.b16 %v949, %v947
      %v1080 = vpack.c.b16 %v952, %v950
      %v1081 = vpack.c.b16 %v953, %v951
      %v1082 = vpack.c.b16 %v956, %v954
      %v1083 = vpack.c.b16 %v957, %v955
      %v1084 = vpack.c.b16 %v960, %v958
      %v1085 = vpack.c.b16 %v961, %v959
      %v1086 = vpack.c.b16 %v964, %v962
      %v1087 = vpack.c.b16 %v965, %v963
      %v1088 = vpack.c.b16 %v968, %v966
      %v1089 = vpack.c.b16 %v969, %v967
      %v1090 = vpack.c.b16 %v972, %v970
      %v1091 = vpack.c.b16 %v973, %v971
      %v1092 = vpack.c.b16 %v976, %v974
      %v1093 = vpack.c.b16 %v977, %v975
      %v1094 = vpack.c.b16 %v980, %v978
      %v1095 = vpack.c.b16 %v981, %v979
      %v1096 = vpack.c.b16 %v984, %v982
      %v1097 = vpack.c.b16 %v985, %v983
      %v1098 = vpack.c.b16 %v988, %v986
      %v1099 = vpack.c.b16 %v989, %v987
      %v1100 = vpack.c.b16 %v992, %v990
      %v1101 = vpack.c.b16 %v993, %v991
      %v1102 = vpack.c.b16 %v996, %v994
      %v1103 = vpack.c.b16 %v997, %v995
      %v1104 = vpack.c.b16 %v1000, %v998
      %v1105 = vpack.c.b16 %v1001, %v999
      %v1106 = vpack.c.b16 %v1004, %v1002
      %v1107 = vpack.c.b16 %v1005, %v1003
      %v1108 = vpack.c.b16 %v1008, %v1006
      %v1109 = vpack.c.b16 %v1009, %v1007
      %v1110 = vpack.c.b16 %v1012, %v1010
      %v1111 = vpack.c.b16 %v1013, %v1011
      %vm1210 = vcmask 130048
      %v1212 = vsel %vm1210, %v516, 0
      %v1215 = vsel %vm1210, %v523, 0
      %v1218 = vsel %vm1210, %v530, 0
      %v1221 = vsel %vm1210, %v537, 0
      %v1224 = vsel %vm1210, %v544, 0
      %v1227 = vsel %vm1210, %v551, 0
      %v1230 = vsel %vm1210, %v558, 0
      %v1233 = vsel %vm1210, %v565, 0
      %v1236 = vsel %vm1210, %v572, 0
      %v1239 = vsel %vm1210, %v579, 0
      %v1242 = vsel %vm1210, %v586, 0
      %v1245 = vsel %vm1210, %v593, 0
      %v1248 = vsel %vm1210, %v600, 0
      %v1251 = vsel %vm1210, %v607, 0
      %v1254 = vsel %vm1210, %v614, 0
      %v1257 = vsel %vm1210, %v621, 0
      %1259 = vmatprep.subr.bf16.mxu0 %v1029
      %1260 = vmatpush1.bf16.msra.mxu0 %v1028
      %1261 = vmatprep.subr.bf16.mxu0 %v1027
      %1262 = vmatpush1.bf16.msra.mxu0 %v1026
      %1263 = vmatprep.subr.bf16.mxu0 %v1025
      %1264 = vmatpush1.bf16.msra.mxu0 %v1024
      %1265 = vmatprep.subr.bf16.mxu0 %v1023
      %1266 = vmatpush1.bf16.msra.mxu0 %v1022
      %1267 = vmatprep.subr.bf16.mxu0 %v1021
      %1268 = vmatpush1.bf16.msra.mxu0 %v1020
      %1269 = vmatprep.subr.bf16.mxu0 %v1019
      %1270 = vmatpush1.bf16.msra.mxu0 %v1018
      %1271 = vmatprep.subr.bf16.mxu0 %v1017
      %1272 = vmatpush1.bf16.msra.mxu0 %v1016
      %1273 = vmatprep.subr.bf16.mxu0 %v1015
      %1274 = vmatpush1.bf16.msra.mxu0 %v1014
      %1275 = vmatprep.subr.bf16.mxu0 %v1045
      %1276 = vmatpush2.bf16.msra.mxu0 %v1044
      %1277 = vmatprep.subr.bf16.mxu0 %v1043
      %1278 = vmatpush2.bf16.msra.mxu0 %v1042
      %1279 = vmatprep.subr.bf16.mxu0 %v1041
      %1280 = vmatpush2.bf16.msra.mxu0 %v1040
      %1281 = vmatprep.subr.bf16.mxu0 %v1039
      %1282 = vmatpush2.bf16.msra.mxu0 %v1038
      %1283 = vmatprep.subr.bf16.mxu0 %v1037
      %1284 = vmatpush2.bf16.msra.mxu0 %v1036
      %1285 = vmatprep.subr.bf16.mxu0 %v1035
      %1286 = vmatpush2.bf16.msra.mxu0 %v1034
      %1287 = vmatprep.subr.bf16.mxu0 %v1033
      %1288 = vmatpush2.bf16.msra.mxu0 %v1032
      %1289 = vmatprep.subr.bf16.mxu0 %v1031
      %1290 = vmatpush2.bf16.msra.mxu0 %v1030
      %1291 = vmatprep.mubr.bf16.mxu0 %v511
      %1292 = vmatmul.mubr.bf16.gmra.mxu0 %v510
      %v1293 = vpop.f32.mrf.mxu0
      %v1294 = vadd.f32 0.0, %v1293
      %v1295 = vpop.f32.mrf.mxu0
      %v1296 = vadd.f32 0.0, %v1295
      %v1297 = vpop.f32.mrf.mxu0
      %v1298 = vadd.f32 0.0, %v1297
      %v1299 = vpop.f32.mrf.mxu0
      %v1300 = vadd.f32 0.0, %v1299
      %1301 = vmatprep.mubr.bf16.mxu0 %v518
      %1302 = vmatmul.mubr.bf16.gmra.mxu0 %v517
      %v1303 = vpop.f32.mrf.mxu0
      %v1304 = vadd.f32 0.0, %v1303
      %v1305 = vpop.f32.mrf.mxu0
      %v1306 = vadd.f32 0.0, %v1305
      %v1307 = vpop.f32.mrf.mxu0
      %v1308 = vadd.f32 0.0, %v1307
      %v1309 = vpop.f32.mrf.mxu0
      %v1310 = vadd.f32 0.0, %v1309
      %1311 = vmatprep.mubr.bf16.mxu0 %v525
      %1312 = vmatmul.mubr.bf16.gmra.mxu0 %v524
      %v1313 = vpop.f32.mrf.mxu0
      %v1314 = vadd.f32 0.0, %v1313
      %v1315 = vpop.f32.mrf.mxu0
      %v1316 = vadd.f32 0.0, %v1315
      %v1317 = vpop.f32.mrf.mxu0
      %v1318 = vadd.f32 0.0, %v1317
      %v1319 = vpop.f32.mrf.mxu0
      %v1320 = vadd.f32 0.0, %v1319
      %1321 = vmatprep.mubr.bf16.mxu0 %v532
      %1322 = vmatmul.mubr.bf16.gmra.mxu0 %v531
      %v1323 = vpop.f32.mrf.mxu0
      %v1324 = vadd.f32 0.0, %v1323
      %v1325 = vpop.f32.mrf.mxu0
      %v1326 = vadd.f32 0.0, %v1325
      %v1327 = vpop.f32.mrf.mxu0
      %v1328 = vadd.f32 0.0, %v1327
      %v1329 = vpop.f32.mrf.mxu0
      %v1330 = vadd.f32 0.0, %v1329
      %1331 = vmatprep.mubr.bf16.mxu0 %v539
      %1332 = vmatmul.mubr.bf16.gmra.mxu0 %v538
      %v1333 = vpop.f32.mrf.mxu0
      %v1334 = vadd.f32 0.0, %v1333
      %v1335 = vpop.f32.mrf.mxu0
      %v1336 = vadd.f32 0.0, %v1335
      %v1337 = vpop.f32.mrf.mxu0
      %v1338 = vadd.f32 0.0, %v1337
      %v1339 = vpop.f32.mrf.mxu0
      %v1340 = vadd.f32 0.0, %v1339
      %1341 = vmatprep.mubr.bf16.mxu0 %v546
      %1342 = vmatmul.mubr.bf16.gmra.mxu0 %v545
      %v1343 = vpop.f32.mrf.mxu0
      %v1344 = vadd.f32 0.0, %v1343
      %v1345 = vpop.f32.mrf.mxu0
      %v1346 = vadd.f32 0.0, %v1345
      %v1347 = vpop.f32.mrf.mxu0
      %v1348 = vadd.f32 0.0, %v1347
      %v1349 = vpop.f32.mrf.mxu0
      %v1350 = vadd.f32 0.0, %v1349
      %1351 = vmatprep.mubr.bf16.mxu0 %v553
      %1352 = vmatmul.mubr.bf16.gmra.mxu0 %v552
      %v1353 = vpop.f32.mrf.mxu0
      %v1354 = vadd.f32 0.0, %v1353
      %v1355 = vpop.f32.mrf.mxu0
      %v1356 = vadd.f32 0.0, %v1355
      %v1357 = vpop.f32.mrf.mxu0
      %v1358 = vadd.f32 0.0, %v1357
      %v1359 = vpop.f32.mrf.mxu0
      %v1360 = vadd.f32 0.0, %v1359
      %1361 = vmatprep.mubr.bf16.mxu0 %v560
      %1362 = vmatmul.mubr.bf16.gmra.mxu0 %v559
      %v1363 = vpop.f32.mrf.mxu0
      %v1364 = vadd.f32 0.0, %v1363
      %v1365 = vpop.f32.mrf.mxu0
      %v1366 = vadd.f32 0.0, %v1365
      %v1367 = vpop.f32.mrf.mxu0
      %v1368 = vadd.f32 0.0, %v1367
      %v1369 = vpop.f32.mrf.mxu0
      %v1370 = vadd.f32 0.0, %v1369
      %1371 = vmatprep.mubr.bf16.mxu0 %v567
      %1372 = vmatmul.mubr.bf16.gmra.mxu0 %v566
      %v1373 = vpop.f32.mrf.mxu0
      %v1374 = vadd.f32 0.0, %v1373
      %v1375 = vpop.f32.mrf.mxu0
      %v1376 = vadd.f32 0.0, %v1375
      %v1377 = vpop.f32.mrf.mxu0
      %v1378 = vadd.f32 0.0, %v1377
      %v1379 = vpop.f32.mrf.mxu0
      %v1380 = vadd.f32 0.0, %v1379
      %1381 = vmatprep.mubr.bf16.mxu0 %v574
      %1382 = vmatmul.mubr.bf16.gmra.mxu0 %v573
      %v1383 = vpop.f32.mrf.mxu0
      %v1384 = vadd.f32 0.0, %v1383
      %v1385 = vpop.f32.mrf.mxu0
      %v1386 = vadd.f32 0.0, %v1385
      %v1387 = vpop.f32.mrf.mxu0
      %v1388 = vadd.f32 0.0, %v1387
      %v1389 = vpop.f32.mrf.mxu0
      %v1390 = vadd.f32 0.0, %v1389
      %1391 = vmatprep.mubr.bf16.mxu0 %v581
      %1392 = vmatmul.mubr.bf16.gmra.mxu0 %v580
      %v1393 = vpop.f32.mrf.mxu0
      %v1394 = vadd.f32 0.0, %v1393
      %v1395 = vpop.f32.mrf.mxu0
      %v1396 = vadd.f32 0.0, %v1395
      %v1397 = vpop.f32.mrf.mxu0
      %v1398 = vadd.f32 0.0, %v1397
      %v1399 = vpop.f32.mrf.mxu0
      %v1400 = vadd.f32 0.0, %v1399
      %1401 = vmatprep.mubr.bf16.mxu0 %v588
      %1402 = vmatmul.mubr.bf16.gmra.mxu0 %v587
      %v1403 = vpop.f32.mrf.mxu0
      %v1404 = vadd.f32 0.0, %v1403
      %v1405 = vpop.f32.mrf.mxu0
      %v1406 = vadd.f32 0.0, %v1405
      %v1407 = vpop.f32.mrf.mxu0
      %v1408 = vadd.f32 0.0, %v1407
      %v1409 = vpop.f32.mrf.mxu0
      %v1410 = vadd.f32 0.0, %v1409
      %1411 = vmatprep.mubr.bf16.mxu0 %v595
      %1412 = vmatmul.mubr.bf16.gmra.mxu0 %v594
      %v1413 = vpop.f32.mrf.mxu0
      %v1414 = vadd.f32 0.0, %v1413
      %v1415 = vpop.f32.mrf.mxu0
      %v1416 = vadd.f32 0.0, %v1415
      %v1417 = vpop.f32.mrf.mxu0
      %v1418 = vadd.f32 0.0, %v1417
      %v1419 = vpop.f32.mrf.mxu0
      %v1420 = vadd.f32 0.0, %v1419
      %1421 = vmatprep.mubr.bf16.mxu0 %v602
      %1422 = vmatmul.mubr.bf16.gmra.mxu0 %v601
      %v1423 = vpop.f32.mrf.mxu0
      %v1424 = vadd.f32 0.0, %v1423
      %v1425 = vpop.f32.mrf.mxu0
      %v1426 = vadd.f32 0.0, %v1425
      %v1427 = vpop.f32.mrf.mxu0
      %v1428 = vadd.f32 0.0, %v1427
      %v1429 = vpop.f32.mrf.mxu0
      %v1430 = vadd.f32 0.0, %v1429
      %1431 = vmatprep.mubr.bf16.mxu0 %v609
      %1432 = vmatmul.mubr.bf16.gmra.mxu0 %v608
      %v1433 = vpop.f32.mrf.mxu0
      %v1434 = vadd.f32 0.0, %v1433
      %v1435 = vpop.f32.mrf.mxu0
      %v1436 = vadd.f32 0.0, %v1435
      %v1437 = vpop.f32.mrf.mxu0
      %v1438 = vadd.f32 0.0, %v1437
      %v1439 = vpop.f32.mrf.mxu0
      %v1440 = vadd.f32 0.0, %v1439
      %1441 = vmatprep.mubr.bf16.mxu0 %v616
      %1442 = vmatmul.mubr.bf16.gmra.mxu0 %v615
      %v1443 = vpop.f32.mrf.mxu0
      %v1444 = vadd.f32 0.0, %v1443
      %v1445 = vpop.f32.mrf.mxu0
      %v1446 = vadd.f32 0.0, %v1445
      %v1447 = vpop.f32.mrf.mxu0
      %v1448 = vadd.f32 0.0, %v1447
      %v1449 = vpop.f32.mrf.mxu0
      %v1450 = vadd.f32 0.0, %v1449
      %1451 = vdwg.mxu0
      %1452 = vmatprep.subr.bf16.mxu0 %v1061
      %1453 = vmatpush1.bf16.msra.mxu0 %v1060
      %1454 = vmatprep.subr.bf16.mxu0 %v1059
      %1455 = vmatpush1.bf16.msra.mxu0 %v1058
      %1456 = vmatprep.subr.bf16.mxu0 %v1057
      %1457 = vmatpush1.bf16.msra.mxu0 %v1056
      %1458 = vmatprep.subr.bf16.mxu0 %v1055
      %1459 = vmatpush1.bf16.msra.mxu0 %v1054
      %1460 = vmatprep.subr.bf16.mxu0 %v1053
      %1461 = vmatpush1.bf16.msra.mxu0 %v1052
      %1462 = vmatprep.subr.bf16.mxu0 %v1051
      %1463 = vmatpush1.bf16.msra.mxu0 %v1050
      %1464 = vmatprep.subr.bf16.mxu0 %v1049
      %1465 = vmatpush1.bf16.msra.mxu0 %v1048
      %1466 = vmatprep.subr.bf16.mxu0 %v1047
      %1467 = vmatpush1.bf16.msra.mxu0 %v1046
      %1468 = vmatprep.subr.bf16.mxu0 %v1077
      %1469 = vmatpush2.bf16.msra.mxu0 %v1076
      %1470 = vmatprep.subr.bf16.mxu0 %v1075
      %1471 = vmatpush2.bf16.msra.mxu0 %v1074
      %1472 = vmatprep.subr.bf16.mxu0 %v1073
      %1473 = vmatpush2.bf16.msra.mxu0 %v1072
      %1474 = vmatprep.subr.bf16.mxu0 %v1071
      %1475 = vmatpush2.bf16.msra.mxu0 %v1070
      %1476 = vmatprep.subr.bf16.mxu0 %v1069
      %1477 = vmatpush2.bf16.msra.mxu0 %v1068
      %1478 = vmatprep.subr.bf16.mxu0 %v1067
      %1479 = vmatpush2.bf16.msra.mxu0 %v1066
      %1480 = vmatprep.subr.bf16.mxu0 %v1065
      %1481 = vmatpush2.bf16.msra.mxu0 %v1064
      %1482 = vmatprep.subr.bf16.mxu0 %v1063
      %1483 = vmatpush2.bf16.msra.mxu0 %v1062
      %1484 = vmatprep.mubr.bf16.mxu0 %v513
      %1485 = vmatmul.mubr.bf16.gmra.mxu0 %v512
      %v1486 = vpop.f32.mrf.mxu0
      %v1487 = vadd.f32 %v1294, %v1486
      %v1488 = vpop.f32.mrf.mxu0
      %v1489 = vadd.f32 %v1296, %v1488
      %v1490 = vpop.f32.mrf.mxu0
      %v1491 = vadd.f32 %v1298, %v1490
      %v1492 = vpop.f32.mrf.mxu0
      %v1493 = vadd.f32 %v1300, %v1492
      %1494 = vmatprep.mubr.bf16.mxu0 %v520
      %1495 = vmatmul.mubr.bf16.gmra.mxu0 %v519
      %v1496 = vpop.f32.mrf.mxu0
      %v1497 = vadd.f32 %v1304, %v1496
      %v1498 = vpop.f32.mrf.mxu0
      %v1499 = vadd.f32 %v1306, %v1498
      %v1500 = vpop.f32.mrf.mxu0
      %v1501 = vadd.f32 %v1308, %v1500
      %v1502 = vpop.f32.mrf.mxu0
      %v1503 = vadd.f32 %v1310, %v1502
      %1504 = vmatprep.mubr.bf16.mxu0 %v527
      %1505 = vmatmul.mubr.bf16.gmra.mxu0 %v526
      %v1506 = vpop.f32.mrf.mxu0
      %v1507 = vadd.f32 %v1314, %v1506
      %v1508 = vpop.f32.mrf.mxu0
      %v1509 = vadd.f32 %v1316, %v1508
      %v1510 = vpop.f32.mrf.mxu0
      %v1511 = vadd.f32 %v1318, %v1510
      %v1512 = vpop.f32.mrf.mxu0
      %v1513 = vadd.f32 %v1320, %v1512
      %1514 = vmatprep.mubr.bf16.mxu0 %v534
      %1515 = vmatmul.mubr.bf16.gmra.mxu0 %v533
      %v1516 = vpop.f32.mrf.mxu0
      %v1517 = vadd.f32 %v1324, %v1516
      %v1518 = vpop.f32.mrf.mxu0
      %v1519 = vadd.f32 %v1326, %v1518
      %v1520 = vpop.f32.mrf.mxu0
      %v1521 = vadd.f32 %v1328, %v1520
      %v1522 = vpop.f32.mrf.mxu0
      %v1523 = vadd.f32 %v1330, %v1522
      %1524 = vmatprep.mubr.bf16.mxu0 %v541
      %1525 = vmatmul.mubr.bf16.gmra.mxu0 %v540
      %v1526 = vpop.f32.mrf.mxu0
      %v1527 = vadd.f32 %v1334, %v1526
      %v1528 = vpop.f32.mrf.mxu0
      %v1529 = vadd.f32 %v1336, %v1528
      %v1530 = vpop.f32.mrf.mxu0
      %v1531 = vadd.f32 %v1338, %v1530
      %v1532 = vpop.f32.mrf.mxu0
      %v1533 = vadd.f32 %v1340, %v1532
      %1534 = vmatprep.mubr.bf16.mxu0 %v548
      %1535 = vmatmul.mubr.bf16.gmra.mxu0 %v547
      %v1536 = vpop.f32.mrf.mxu0
      %v1537 = vadd.f32 %v1344, %v1536
      %v1538 = vpop.f32.mrf.mxu0
      %v1539 = vadd.f32 %v1346, %v1538
      %v1540 = vpop.f32.mrf.mxu0
      %v1541 = vadd.f32 %v1348, %v1540
      %v1542 = vpop.f32.mrf.mxu0
      %v1543 = vadd.f32 %v1350, %v1542
      %1544 = vmatprep.mubr.bf16.mxu0 %v555
      %1545 = vmatmul.mubr.bf16.gmra.mxu0 %v554
      %v1546 = vpop.f32.mrf.mxu0
      %v1547 = vadd.f32 %v1354, %v1546
      %v1548 = vpop.f32.mrf.mxu0
      %v1549 = vadd.f32 %v1356, %v1548
      %v1550 = vpop.f32.mrf.mxu0
      %v1551 = vadd.f32 %v1358, %v1550
      %v1552 = vpop.f32.mrf.mxu0
      %v1553 = vadd.f32 %v1360, %v1552
      %1554 = vmatprep.mubr.bf16.mxu0 %v562
      %1555 = vmatmul.mubr.bf16.gmra.mxu0 %v561
      %v1556 = vpop.f32.mrf.mxu0
      %v1557 = vadd.f32 %v1364, %v1556
      %v1558 = vpop.f32.mrf.mxu0
      %v1559 = vadd.f32 %v1366, %v1558
      %v1560 = vpop.f32.mrf.mxu0
      %v1561 = vadd.f32 %v1368, %v1560
      %v1562 = vpop.f32.mrf.mxu0
      %v1563 = vadd.f32 %v1370, %v1562
      %1564 = vmatprep.mubr.bf16.mxu0 %v569
      %1565 = vmatmul.mubr.bf16.gmra.mxu0 %v568
      %v1566 = vpop.f32.mrf.mxu0
      %v1567 = vadd.f32 %v1374, %v1566
      %v1568 = vpop.f32.mrf.mxu0
      %v1569 = vadd.f32 %v1376, %v1568
      %v1570 = vpop.f32.mrf.mxu0
      %v1571 = vadd.f32 %v1378, %v1570
      %v1572 = vpop.f32.mrf.mxu0
      %v1573 = vadd.f32 %v1380, %v1572
      %1574 = vmatprep.mubr.bf16.mxu0 %v576
      %1575 = vmatmul.mubr.bf16.gmra.mxu0 %v575
      %v1576 = vpop.f32.mrf.mxu0
      %v1577 = vadd.f32 %v1384, %v1576
      %v1578 = vpop.f32.mrf.mxu0
      %v1579 = vadd.f32 %v1386, %v1578
      %v1580 = vpop.f32.mrf.mxu0
      %v1581 = vadd.f32 %v1388, %v1580
      %v1582 = vpop.f32.mrf.mxu0
      %v1583 = vadd.f32 %v1390, %v1582
      %1584 = vmatprep.mubr.bf16.mxu0 %v583
      %1585 = vmatmul.mubr.bf16.gmra.mxu0 %v582
      %v1586 = vpop.f32.mrf.mxu0
      %v1587 = vadd.f32 %v1394, %v1586
      %v1588 = vpop.f32.mrf.mxu0
      %v1589 = vadd.f32 %v1396, %v1588
      %v1590 = vpop.f32.mrf.mxu0
      %v1591 = vadd.f32 %v1398, %v1590
      %v1592 = vpop.f32.mrf.mxu0
      %v1593 = vadd.f32 %v1400, %v1592
      %1594 = vmatprep.mubr.bf16.mxu0 %v590
      %1595 = vmatmul.mubr.bf16.gmra.mxu0 %v589
      %v1596 = vpop.f32.mrf.mxu0
      %v1597 = vadd.f32 %v1404, %v1596
      %v1598 = vpop.f32.mrf.mxu0
      %v1599 = vadd.f32 %v1406, %v1598
      %v1600 = vpop.f32.mrf.mxu0
      %v1601 = vadd.f32 %v1408, %v1600
      %v1602 = vpop.f32.mrf.mxu0
      %v1603 = vadd.f32 %v1410, %v1602
      %1604 = vmatprep.mubr.bf16.mxu0 %v597
      %1605 = vmatmul.mubr.bf16.gmra.mxu0 %v596
      %v1606 = vpop.f32.mrf.mxu0
      %v1607 = vadd.f32 %v1414, %v1606
      %v1608 = vpop.f32.mrf.mxu0
      %v1609 = vadd.f32 %v1416, %v1608
      %v1610 = vpop.f32.mrf.mxu0
      %v1611 = vadd.f32 %v1418, %v1610
      %v1612 = vpop.f32.mrf.mxu0
      %v1613 = vadd.f32 %v1420, %v1612
      %1614 = vmatprep.mubr.bf16.mxu0 %v604
      %1615 = vmatmul.mubr.bf16.gmra.mxu0 %v603
      %v1616 = vpop.f32.mrf.mxu0
      %v1617 = vadd.f32 %v1424, %v1616
      %v1618 = vpop.f32.mrf.mxu0
      %v1619 = vadd.f32 %v1426, %v1618
      %v1620 = vpop.f32.mrf.mxu0
      %v1621 = vadd.f32 %v1428, %v1620
      %v1622 = vpop.f32.mrf.mxu0
      %v1623 = vadd.f32 %v1430, %v1622
      %1624 = vmatprep.mubr.bf16.mxu0 %v611
      %1625 = vmatmul.mubr.bf16.gmra.mxu0 %v610
      %v1626 = vpop.f32.mrf.mxu0
      %v1627 = vadd.f32 %v1434, %v1626
      %v1628 = vpop.f32.mrf.mxu0
      %v1629 = vadd.f32 %v1436, %v1628
      %v1630 = vpop.f32.mrf.mxu0
      %v1631 = vadd.f32 %v1438, %v1630
      %v1632 = vpop.f32.mrf.mxu0
      %v1633 = vadd.f32 %v1440, %v1632
      %1634 = vmatprep.mubr.bf16.mxu0 %v618
      %1635 = vmatmul.mubr.bf16.gmra.mxu0 %v617
      %v1636 = vpop.f32.mrf.mxu0
      %v1637 = vadd.f32 %v1444, %v1636
      %v1638 = vpop.f32.mrf.mxu0
      %v1639 = vadd.f32 %v1446, %v1638
      %v1640 = vpop.f32.mrf.mxu0
      %v1641 = vadd.f32 %v1448, %v1640
      %v1642 = vpop.f32.mrf.mxu0
      %v1643 = vadd.f32 %v1450, %v1642
      %1644 = vdwg.mxu0
      %1645 = vmatprep.subr.bf16.mxu0 %v1093
      %1646 = vmatpush1.bf16.msra.mxu0 %v1092
      %1647 = vmatprep.subr.bf16.mxu0 %v1091
      %1648 = vmatpush1.bf16.msra.mxu0 %v1090
      %1649 = vmatprep.subr.bf16.mxu0 %v1089
      %1650 = vmatpush1.bf16.msra.mxu0 %v1088
      %1651 = vmatprep.subr.bf16.mxu0 %v1087
      %1652 = vmatpush1.bf16.msra.mxu0 %v1086
      %1653 = vmatprep.subr.bf16.mxu0 %v1085
      %1654 = vmatpush1.bf16.msra.mxu0 %v1084
      %1655 = vmatprep.subr.bf16.mxu0 %v1083
      %1656 = vmatpush1.bf16.msra.mxu0 %v1082
      %1657 = vmatprep.subr.bf16.mxu0 %v1081
      %1658 = vmatpush1.bf16.msra.mxu0 %v1080
      %1659 = vmatprep.subr.bf16.mxu0 %v1079
      %1660 = vmatpush1.bf16.msra.mxu0 %v1078
      %1661 = vmatprep.subr.bf16.mxu0 %v1109
      %1662 = vmatpush2.bf16.msra.mxu0 %v1108
      %1663 = vmatprep.subr.bf16.mxu0 %v1107
      %1664 = vmatpush2.bf16.msra.mxu0 %v1106
      %1665 = vmatprep.subr.bf16.mxu0 %v1105
      %1666 = vmatpush2.bf16.msra.mxu0 %v1104
      %1667 = vmatprep.subr.bf16.mxu0 %v1103
      %1668 = vmatpush2.bf16.msra.mxu0 %v1102
      %1669 = vmatprep.subr.bf16.mxu0 %v1101
      %1670 = vmatpush2.bf16.msra.mxu0 %v1100
      %1671 = vmatprep.subr.bf16.mxu0 %v1099
      %1672 = vmatpush2.bf16.msra.mxu0 %v1098
      %1673 = vmatprep.subr.bf16.mxu0 %v1097
      %1674 = vmatpush2.bf16.msra.mxu0 %v1096
      %1675 = vmatprep.subr.bf16.mxu0 %v1095
      %1676 = vmatpush2.bf16.msra.mxu0 %v1094
      %1677 = vmatprep.mubr.bf16.mxu0 %v515
      %1678 = vmatmul.mubr.bf16.gmra.mxu0 %v514
      %v1679 = vpop.f32.mrf.mxu0
      %v1680 = vadd.f32 %v1487, %v1679
      %v1681 = vpop.f32.mrf.mxu0
      %v1682 = vadd.f32 %v1489, %v1681
      %v1683 = vpop.f32.mrf.mxu0
      %v1684 = vadd.f32 %v1491, %v1683
      %v1685 = vpop.f32.mrf.mxu0
      %v1686 = vadd.f32 %v1493, %v1685
      %1687 = vmatprep.mubr.bf16.mxu0 %v522
      %1688 = vmatmul.mubr.bf16.gmra.mxu0 %v521
      %v1689 = vpop.f32.mrf.mxu0
      %v1690 = vadd.f32 %v1497, %v1689
      %v1691 = vpop.f32.mrf.mxu0
      %v1692 = vadd.f32 %v1499, %v1691
      %v1693 = vpop.f32.mrf.mxu0
      %v1694 = vadd.f32 %v1501, %v1693
      %v1695 = vpop.f32.mrf.mxu0
      %v1696 = vadd.f32 %v1503, %v1695
      %1697 = vmatprep.mubr.bf16.mxu0 %v529
      %1698 = vmatmul.mubr.bf16.gmra.mxu0 %v528
      %v1699 = vpop.f32.mrf.mxu0
      %v1700 = vadd.f32 %v1507, %v1699
      %v1701 = vpop.f32.mrf.mxu0
      %v1702 = vadd.f32 %v1509, %v1701
      %v1703 = vpop.f32.mrf.mxu0
      %v1704 = vadd.f32 %v1511, %v1703
      %v1705 = vpop.f32.mrf.mxu0
      %v1706 = vadd.f32 %v1513, %v1705
      %1707 = vmatprep.mubr.bf16.mxu0 %v536
      %1708 = vmatmul.mubr.bf16.gmra.mxu0 %v535
      %v1709 = vpop.f32.mrf.mxu0
      %v1710 = vadd.f32 %v1517, %v1709
      %v1711 = vpop.f32.mrf.mxu0
      %v1712 = vadd.f32 %v1519, %v1711
      %v1713 = vpop.f32.mrf.mxu0
      %v1714 = vadd.f32 %v1521, %v1713
      %v1715 = vpop.f32.mrf.mxu0
      %v1716 = vadd.f32 %v1523, %v1715
      %1717 = vmatprep.mubr.bf16.mxu0 %v543
      %1718 = vmatmul.mubr.bf16.gmra.mxu0 %v542
      %v1719 = vpop.f32.mrf.mxu0
      %v1720 = vadd.f32 %v1527, %v1719
      %v1721 = vpop.f32.mrf.mxu0
      %v1722 = vadd.f32 %v1529, %v1721
      %v1723 = vpop.f32.mrf.mxu0
      %v1724 = vadd.f32 %v1531, %v1723
      %v1725 = vpop.f32.mrf.mxu0
      %v1726 = vadd.f32 %v1533, %v1725
      %1727 = vmatprep.mubr.bf16.mxu0 %v550
      %1728 = vmatmul.mubr.bf16.gmra.mxu0 %v549
      %v1729 = vpop.f32.mrf.mxu0
      %v1730 = vadd.f32 %v1537, %v1729
      %v1731 = vpop.f32.mrf.mxu0
      %v1732 = vadd.f32 %v1539, %v1731
      %v1733 = vpop.f32.mrf.mxu0
      %v1734 = vadd.f32 %v1541, %v1733
      %v1735 = vpop.f32.mrf.mxu0
      %v1736 = vadd.f32 %v1543, %v1735
      %1737 = vmatprep.mubr.bf16.mxu0 %v557
      %1738 = vmatmul.mubr.bf16.gmra.mxu0 %v556
      %v1739 = vpop.f32.mrf.mxu0
      %v1740 = vadd.f32 %v1547, %v1739
      %v1741 = vpop.f32.mrf.mxu0
      %v1742 = vadd.f32 %v1549, %v1741
      %v1743 = vpop.f32.mrf.mxu0
      %v1744 = vadd.f32 %v1551, %v1743
      %v1745 = vpop.f32.mrf.mxu0
      %v1746 = vadd.f32 %v1553, %v1745
      %1747 = vmatprep.mubr.bf16.mxu0 %v564
      %1748 = vmatmul.mubr.bf16.gmra.mxu0 %v563
      %v1749 = vpop.f32.mrf.mxu0
      %v1750 = vadd.f32 %v1557, %v1749
      %v1751 = vpop.f32.mrf.mxu0
      %v1752 = vadd.f32 %v1559, %v1751
      %v1753 = vpop.f32.mrf.mxu0
      %v1754 = vadd.f32 %v1561, %v1753
      %v1755 = vpop.f32.mrf.mxu0
      %v1756 = vadd.f32 %v1563, %v1755
      %1757 = vmatprep.mubr.bf16.mxu0 %v571
      %1758 = vmatmul.mubr.bf16.gmra.mxu0 %v570
      %v1759 = vpop.f32.mrf.mxu0
      %v1760 = vadd.f32 %v1567, %v1759
      %v1761 = vpop.f32.mrf.mxu0
      %v1762 = vadd.f32 %v1569, %v1761
      %v1763 = vpop.f32.mrf.mxu0
      %v1764 = vadd.f32 %v1571, %v1763
      %v1765 = vpop.f32.mrf.mxu0
      %v1766 = vadd.f32 %v1573, %v1765
      %1767 = vmatprep.mubr.bf16.mxu0 %v578
      %1768 = vmatmul.mubr.bf16.gmra.mxu0 %v577
      %v1769 = vpop.f32.mrf.mxu0
      %v1770 = vadd.f32 %v1577, %v1769
      %v1771 = vpop.f32.mrf.mxu0
      %v1772 = vadd.f32 %v1579, %v1771
      %v1773 = vpop.f32.mrf.mxu0
      %v1774 = vadd.f32 %v1581, %v1773
      %v1775 = vpop.f32.mrf.mxu0
      %v1776 = vadd.f32 %v1583, %v1775
      %1777 = vmatprep.mubr.bf16.mxu0 %v585
      %1778 = vmatmul.mubr.bf16.gmra.mxu0 %v584
      %v1779 = vpop.f32.mrf.mxu0
      %v1780 = vadd.f32 %v1587, %v1779
      %v1781 = vpop.f32.mrf.mxu0
      %v1782 = vadd.f32 %v1589, %v1781
      %v1783 = vpop.f32.mrf.mxu0
      %v1784 = vadd.f32 %v1591, %v1783
      %v1785 = vpop.f32.mrf.mxu0
      %v1786 = vadd.f32 %v1593, %v1785
      %1787 = vmatprep.mubr.bf16.mxu0 %v592
      %1788 = vmatmul.mubr.bf16.gmra.mxu0 %v591
      %v1789 = vpop.f32.mrf.mxu0
      %v1790 = vadd.f32 %v1597, %v1789
      %v1791 = vpop.f32.mrf.mxu0
      %v1792 = vadd.f32 %v1599, %v1791
      %v1793 = vpop.f32.mrf.mxu0
      %v1794 = vadd.f32 %v1601, %v1793
      %v1795 = vpop.f32.mrf.mxu0
      %v1796 = vadd.f32 %v1603, %v1795
      %1797 = vmatprep.mubr.bf16.mxu0 %v599
      %1798 = vmatmul.mubr.bf16.gmra.mxu0 %v598
      %v1799 = vpop.f32.mrf.mxu0
      %v1800 = vadd.f32 %v1607, %v1799
      %v1801 = vpop.f32.mrf.mxu0
      %v1802 = vadd.f32 %v1609, %v1801
      %v1803 = vpop.f32.mrf.mxu0
      %v1804 = vadd.f32 %v1611, %v1803
      %v1805 = vpop.f32.mrf.mxu0
      %v1806 = vadd.f32 %v1613, %v1805
      %1807 = vmatprep.mubr.bf16.mxu0 %v606
      %1808 = vmatmul.mubr.bf16.gmra.mxu0 %v605
      %v1809 = vpop.f32.mrf.mxu0
      %v1810 = vadd.f32 %v1617, %v1809
      %v1811 = vpop.f32.mrf.mxu0
      %v1812 = vadd.f32 %v1619, %v1811
      %v1813 = vpop.f32.mrf.mxu0
      %v1814 = vadd.f32 %v1621, %v1813
      %v1815 = vpop.f32.mrf.mxu0
      %v1816 = vadd.f32 %v1623, %v1815
      %1817 = vmatprep.mubr.bf16.mxu0 %v613
      %1818 = vmatmul.mubr.bf16.gmra.mxu0 %v612
      %v1819 = vpop.f32.mrf.mxu0
      %v1820 = vadd.f32 %v1627, %v1819
      %v1821 = vpop.f32.mrf.mxu0
      %v1822 = vadd.f32 %v1629, %v1821
      %v1823 = vpop.f32.mrf.mxu0
      %v1824 = vadd.f32 %v1631, %v1823
      %v1825 = vpop.f32.mrf.mxu0
      %v1826 = vadd.f32 %v1633, %v1825
      %1827 = vmatprep.mubr.bf16.mxu0 %v620
      %1828 = vmatmul.mubr.bf16.gmra.mxu0 %v619
      %v1829 = vpop.f32.mrf.mxu0
      %v1830 = vadd.f32 %v1637, %v1829
      %v1831 = vpop.f32.mrf.mxu0
      %v1832 = vadd.f32 %v1639, %v1831
      %v1833 = vpop.f32.mrf.mxu0
      %v1834 = vadd.f32 %v1641, %v1833
      %v1835 = vpop.f32.mrf.mxu0
      %v1836 = vadd.f32 %v1643, %v1835
      %1837 = vdwg.mxu0
      %1838 = vmatprep.subr.bf16.mxu0 0
      %1839 = vmatpush1.bf16.msra.mxu0 0
      %1840 = vmatprep.subr.bf16.mxu0 0
      %1841 = vmatpush1.bf16.msra.mxu0 0
      %1842 = vmatprep.subr.bf16.mxu0 0
      %1843 = vmatpush1.bf16.msra.mxu0 0
      %1844 = vmatprep.subr.bf16.mxu0 0
      %1845 = vmatpush1.bf16.msra.mxu0 0
      %1846 = vmatprep.subr.bf16.mxu0 0
      %1847 = vmatpush1.bf16.msra.mxu0 0
      %1848 = vmatprep.subr.bf16.mxu0 0
      %1849 = vmatpush1.bf16.msra.mxu0 0
      %1850 = vmatprep.subr.bf16.mxu0 0
      %1851 = vmatpush1.bf16.msra.mxu0 0
      %1852 = vmatprep.subr.bf16.mxu0 %v1111
      %1853 = vmatpush1.bf16.msra.mxu0 %v1110
      %1854 = vmatprep.subr.bf16.mxu0 0
      %1855 = vmatpush2.bf16.msra.mxu0 0
      %1856 = vmatprep.subr.bf16.mxu0 0
      %1857 = vmatpush2.bf16.msra.mxu0 0
      %1858 = vmatprep.subr.bf16.mxu0 0
      %1859 = vmatpush2.bf16.msra.mxu0 0
      %1860 = vmatprep.subr.bf16.mxu0 0
      %1861 = vmatpush2.bf16.msra.mxu0 0
      %1862 = vmatprep.subr.bf16.mxu0 0
      %1863 = vmatpush2.bf16.msra.mxu0 0
      %1864 = vmatprep.subr.bf16.mxu0 0
      %1865 = vmatpush2.bf16.msra.mxu0 0
      %1866 = vmatprep.subr.bf16.mxu0 0
      %1867 = vmatpush2.bf16.msra.mxu0 0
      %1868 = vmatprep.subr.bf16.mxu0 0
      %1869 = vmatpush2.bf16.msra.mxu0 0
      %1870 = vmatprep.mubr.bf16.mxu0 0
      %1871 = vmatmul.mubr.bf16.gmra.mxu0 %v1212
      %v1872 = vpop.f32.mrf.mxu0
      %v1873 = vadd.f32 %v1680, %v1872
      %v1874 = vpop.f32.mrf.mxu0
      %v1875 = vadd.f32 %v1682, %v1874
      %v1876 = vpop.f32.mrf.mxu0
      %v1877 = vadd.f32 %v1684, %v1876
      %v1878 = vpop.f32.mrf.mxu0
      %v1879 = vadd.f32 %v1686, %v1878
      %1880 = vmatprep.mubr.bf16.mxu0 0
      %1881 = vmatmul.mubr.bf16.gmra.mxu0 %v1215
      %v1882 = vpop.f32.mrf.mxu0
      %v1883 = vadd.f32 %v1690, %v1882
      %v1884 = vpop.f32.mrf.mxu0
      %v1885 = vadd.f32 %v1692, %v1884
      %v1886 = vpop.f32.mrf.mxu0
      %v1887 = vadd.f32 %v1694, %v1886
      %v1888 = vpop.f32.mrf.mxu0
      %v1889 = vadd.f32 %v1696, %v1888
      %1890 = vmatprep.mubr.bf16.mxu0 0
      %1891 = vmatmul.mubr.bf16.gmra.mxu0 %v1218
      %v1892 = vpop.f32.mrf.mxu0
      %v1893 = vadd.f32 %v1700, %v1892
      %v1894 = vpop.f32.mrf.mxu0
      %v1895 = vadd.f32 %v1702, %v1894
      %v1896 = vpop.f32.mrf.mxu0
      %v1897 = vadd.f32 %v1704, %v1896
      %v1898 = vpop.f32.mrf.mxu0
      %v1899 = vadd.f32 %v1706, %v1898
      %1900 = vmatprep.mubr.bf16.mxu0 0
      %1901 = vmatmul.mubr.bf16.gmra.mxu0 %v1221
      %v1902 = vpop.f32.mrf.mxu0
      %v1903 = vadd.f32 %v1710, %v1902
      %v1904 = vpop.f32.mrf.mxu0
      %v1905 = vadd.f32 %v1712, %v1904
      %v1906 = vpop.f32.mrf.mxu0
      %v1907 = vadd.f32 %v1714, %v1906
      %v1908 = vpop.f32.mrf.mxu0
      %v1909 = vadd.f32 %v1716, %v1908
      %1910 = vmatprep.mubr.bf16.mxu0 0
      %1911 = vmatmul.mubr.bf16.gmra.mxu0 %v1224
      %v1912 = vpop.f32.mrf.mxu0
      %v1913 = vadd.f32 %v1720, %v1912
      %v1914 = vpop.f32.mrf.mxu0
      %v1915 = vadd.f32 %v1722, %v1914
      %v1916 = vpop.f32.mrf.mxu0
      %v1917 = vadd.f32 %v1724, %v1916
      %v1918 = vpop.f32.mrf.mxu0
      %v1919 = vadd.f32 %v1726, %v1918
      %1920 = vmatprep.mubr.bf16.mxu0 0
      %1921 = vmatmul.mubr.bf16.gmra.mxu0 %v1227
      %v1922 = vpop.f32.mrf.mxu0
      %v1923 = vadd.f32 %v1730, %v1922
      %v1924 = vpop.f32.mrf.mxu0
      %v1925 = vadd.f32 %v1732, %v1924
      %v1926 = vpop.f32.mrf.mxu0
      %v1927 = vadd.f32 %v1734, %v1926
      %v1928 = vpop.f32.mrf.mxu0
      %v1929 = vadd.f32 %v1736, %v1928
      %1930 = vmatprep.mubr.bf16.mxu0 0
      %1931 = vmatmul.mubr.bf16.gmra.mxu0 %v1230
      %v1932 = vpop.f32.mrf.mxu0
      %v1933 = vadd.f32 %v1740, %v1932
      %v1934 = vpop.f32.mrf.mxu0
      %v1935 = vadd.f32 %v1742, %v1934
      %v1936 = vpop.f32.mrf.mxu0
      %v1937 = vadd.f32 %v1744, %v1936
      %v1938 = vpop.f32.mrf.mxu0
      %v1939 = vadd.f32 %v1746, %v1938
      %1940 = vmatprep.mubr.bf16.mxu0 0
      %1941 = vmatmul.mubr.bf16.gmra.mxu0 %v1233
      %v1942 = vpop.f32.mrf.mxu0
      %v1943 = vadd.f32 %v1750, %v1942
      %v1944 = vpop.f32.mrf.mxu0
      %v1945 = vadd.f32 %v1752, %v1944
      %v1946 = vpop.f32.mrf.mxu0
      %v1947 = vadd.f32 %v1754, %v1946
      %v1948 = vpop.f32.mrf.mxu0
      %v1949 = vadd.f32 %v1756, %v1948
      %1950 = vmatprep.mubr.bf16.mxu0 0
      %1951 = vmatmul.mubr.bf16.gmra.mxu0 %v1236
      %v1952 = vpop.f32.mrf.mxu0
      %v1953 = vadd.f32 %v1760, %v1952
      %v1954 = vpop.f32.mrf.mxu0
      %v1955 = vadd.f32 %v1762, %v1954
      %v1956 = vpop.f32.mrf.mxu0
      %v1957 = vadd.f32 %v1764, %v1956
      %v1958 = vpop.f32.mrf.mxu0
      %v1959 = vadd.f32 %v1766, %v1958
      %1960 = vmatprep.mubr.bf16.mxu0 0
      %1961 = vmatmul.mubr.bf16.gmra.mxu0 %v1239
      %v1962 = vpop.f32.mrf.mxu0
      %v1963 = vadd.f32 %v1770, %v1962
      %v1964 = vpop.f32.mrf.mxu0
      %v1965 = vadd.f32 %v1772, %v1964
      %v1966 = vpop.f32.mrf.mxu0
      %v1967 = vadd.f32 %v1774, %v1966
      %v1968 = vpop.f32.mrf.mxu0
      %v1969 = vadd.f32 %v1776, %v1968
      %1970 = vmatprep.mubr.bf16.mxu0 0
      %1971 = vmatmul.mubr.bf16.gmra.mxu0 %v1242
      %v1972 = vpop.f32.mrf.mxu0
      %v1973 = vadd.f32 %v1780, %v1972
      %v1974 = vpop.f32.mrf.mxu0
      %v1975 = vadd.f32 %v1782, %v1974
      %v1976 = vpop.f32.mrf.mxu0
      %v1977 = vadd.f32 %v1784, %v1976
      %v1978 = vpop.f32.mrf.mxu0
      %v1979 = vadd.f32 %v1786, %v1978
      %1980 = vmatprep.mubr.bf16.mxu0 0
      %1981 = vmatmul.mubr.bf16.gmra.mxu0 %v1245
      %v1982 = vpop.f32.mrf.mxu0
      %v1983 = vadd.f32 %v1790, %v1982
      %v1984 = vpop.f32.mrf.mxu0
      %v1985 = vadd.f32 %v1792, %v1984
      %v1986 = vpop.f32.mrf.mxu0
      %v1987 = vadd.f32 %v1794, %v1986
      %v1988 = vpop.f32.mrf.mxu0
      %v1989 = vadd.f32 %v1796, %v1988
      %1990 = vmatprep.mubr.bf16.mxu0 0
      %1991 = vmatmul.mubr.bf16.gmra.mxu0 %v1248
      %v1992 = vpop.f32.mrf.mxu0
      %v1993 = vadd.f32 %v1800, %v1992
      %v1994 = vpop.f32.mrf.mxu0
      %v1995 = vadd.f32 %v1802, %v1994
      %v1996 = vpop.f32.mrf.mxu0
      %v1997 = vadd.f32 %v1804, %v1996
      %v1998 = vpop.f32.mrf.mxu0
      %v1999 = vadd.f32 %v1806, %v1998
      %2000 = vmatprep.mubr.bf16.mxu0 0
      %2001 = vmatmul.mubr.bf16.gmra.mxu0 %v1251
      %v2002 = vpop.f32.mrf.mxu0
      %v2003 = vadd.f32 %v1810, %v2002
      %v2004 = vpop.f32.mrf.mxu0
      %v2005 = vadd.f32 %v1812, %v2004
      %v2006 = vpop.f32.mrf.mxu0
      %v2007 = vadd.f32 %v1814, %v2006
      %v2008 = vpop.f32.mrf.mxu0
      %v2009 = vadd.f32 %v1816, %v2008
      %2010 = vmatprep.mubr.bf16.mxu0 0
      %2011 = vmatmul.mubr.bf16.gmra.mxu0 %v1254
      %v2012 = vpop.f32.mrf.mxu0
      %v2013 = vadd.f32 %v1820, %v2012
      %v2014 = vpop.f32.mrf.mxu0
      %v2015 = vadd.f32 %v1822, %v2014
      %v2016 = vpop.f32.mrf.mxu0
      %v2017 = vadd.f32 %v1824, %v2016
      %v2018 = vpop.f32.mrf.mxu0
      %v2019 = vadd.f32 %v1826, %v2018
      %2020 = vmatprep.mubr.bf16.mxu0 0
      %2021 = vmatmul.mubr.bf16.gmra.mxu0 %v1257
      %v2022 = vpop.f32.mrf.mxu0
      %v2023 = vadd.f32 %v1830, %v2022
      %v2024 = vpop.f32.mrf.mxu0
      %v2025 = vadd.f32 %v1832, %v2024
      %v2026 = vpop.f32.mrf.mxu0
      %v2027 = vadd.f32 %v1834, %v2026
      %v2028 = vpop.f32.mrf.mxu0
      %v2029 = vadd.f32 %v1836, %v2028
      %2030 = vdwg.mxu0
      %v2031 = vpack.c.bf16 %v1877, %v1873
      %v2032 = vpack.c.bf16 %v1879, %v1875
      %v2033 = vpack.c.bf16 %v1887, %v1883
      %v2034 = vpack.c.bf16 %v1889, %v1885
      %v2035 = vpack.c.bf16 %v1897, %v1893
      %v2036 = vpack.c.bf16 %v1899, %v1895
      %v2037 = vpack.c.bf16 %v1907, %v1903
      %v2038 = vpack.c.bf16 %v1909, %v1905
      %v2039 = vpack.c.bf16 %v1917, %v1913
      %v2040 = vpack.c.bf16 %v1919, %v1915
      %v2041 = vpack.c.bf16 %v1927, %v1923
      %v2042 = vpack.c.bf16 %v1929, %v1925
      %v2043 = vpack.c.bf16 %v1937, %v1933
      %v2044 = vpack.c.bf16 %v1939, %v1935
      %v2045 = vpack.c.bf16 %v1947, %v1943
      %v2046 = vpack.c.bf16 %v1949, %v1945
      %v2047 = vpack.c.bf16 %v1957, %v1953
      %v2048 = vpack.c.bf16 %v1959, %v1955
      %v2049 = vpack.c.bf16 %v1967, %v1963
      %v2050 = vpack.c.bf16 %v1969, %v1965
      %v2051 = vpack.c.bf16 %v1977, %v1973
      %v2052 = vpack.c.bf16 %v1979, %v1975
      %v2053 = vpack.c.bf16 %v1987, %v1983
      %v2054 = vpack.c.bf16 %v1989, %v1985
      %v2055 = vpack.c.bf16 %v1997, %v1993
      %v2056 = vpack.c.bf16 %v1999, %v1995
      %v2057 = vpack.c.bf16 %v2007, %v2003
      %v2058 = vpack.c.bf16 %v2009, %v2005
      %v2059 = vpack.c.bf16 %v2017, %v2013
      %v2060 = vpack.c.bf16 %v2019, %v2015
      %v2061 = vpack.c.bf16 %v2027, %v2023
      %v2062 = vpack.c.bf16 %v2029, %v2025
      %v2063 = vld [vmem:[%s2] sm:$0x3]
      %v2066 = vunpack.c.l.s4 1966171168
      %v2067 = vunpack.c.0.s8 %v2066
      %v2068 = vlaneseq
      %v2069 = vshrl.u32 %v2068, 7
      %v2070 = vsub.s32 %v2067, %v2069
      %v2071 = vrot.slane %v2063, %v2070
      %v2072 = vcombine.high %v2071, %v2071
      %v2074 = vunpack.c.l.s4 1966171168
      %v2075 = vunpack.c.0.s8 %v2074
      %v2076 = vlaneseq
      %v2077 = vshrl.u32 %v2076, 7
      %v2078 = vsub.s32 %v2075, %v2077
      %v2079 = vrot.slane %v2071, %v2078
      %v2081 = vunpack.c.l.s4 1966171168
      %v2082 = vunpack.c.0.s8 %v2081
      %v2083 = vlaneseq
      %v2084 = vshrl.u32 %v2083, 7
      %v2085 = vsub.s32 %v2082, %v2084
      %v2086 = vrot.slane %v2072, %v2085
      %v2088 = vpack.i.b16 %v2079, %v2079
      %v2090 = vlaneseq
      %v2091 = vshrl.u32 %v2090, 7
      %v2092 = vsub.s32 0, %v2091
      %v2093 = vrot.slane %v2088, %v2092
      %v2095 = vpack.i.b16 %v2086, %v2086
      %v2097 = vlaneseq
      %v2098 = vshrl.u32 %v2097, 7
      %v2099 = vsub.s32 0, %v2098
      %v2100 = vrot.slane %v2095, %v2099
      %v2101 = vadd.bf16 %v2031, %v2093
      %v2102 = vadd.bf16 %v2032, %v2100
      %v2103 = vadd.bf16 %v2033, %v2093
      %v2104 = vadd.bf16 %v2034, %v2100
      %v2105 = vadd.bf16 %v2035, %v2093
      %v2106 = vadd.bf16 %v2036, %v2100
      %v2107 = vadd.bf16 %v2037, %v2093
      %v2108 = vadd.bf16 %v2038, %v2100
      %v2109 = vadd.bf16 %v2039, %v2093
      %v2110 = vadd.bf16 %v2040, %v2100
      %v2111 = vadd.bf16 %v2041, %v2093
      %v2112 = vadd.bf16 %v2042, %v2100
      %v2113 = vadd.bf16 %v2043, %v2093
      %v2114 = vadd.bf16 %v2044, %v2100
      %v2115 = vadd.bf16 %v2045, %v2093
      %v2116 = vadd.bf16 %v2046, %v2100
      %v2117 = vadd.bf16 %v2047, %v2093
      %v2118 = vadd.bf16 %v2048, %v2100
      %v2119 = vadd.bf16 %v2049, %v2093
      %v2120 = vadd.bf16 %v2050, %v2100
      %v2121 = vadd.bf16 %v2051, %v2093
      %v2122 = vadd.bf16 %v2052, %v2100
      %v2123 = vadd.bf16 %v2053, %v2093
      %v2124 = vadd.bf16 %v2054, %v2100
      %v2125 = vadd.bf16 %v2055, %v2093
      %v2126 = vadd.bf16 %v2056, %v2100
      %v2127 = vadd.bf16 %v2057, %v2093
      %v2128 = vadd.bf16 %v2058, %v2100
      %v2129 = vadd.bf16 %v2059, %v2093
      %v2130 = vadd.bf16 %v2060, %v2100
      %v2131 = vadd.bf16 %v2061, %v2093
      %v2132 = vadd.bf16 %v2062, %v2100
      %vm2133 = vcmp.gt.bf16.partialorder %v2101, 0
      %vm2134 = vcmp.gt.bf16.partialorder %v2102, 0
      %vm2135 = vcmp.gt.bf16.partialorder %v2103, 0
      %vm2136 = vcmp.gt.bf16.partialorder %v2104, 0
      %vm2137 = vcmp.gt.bf16.partialorder %v2105, 0
      %vm2138 = vcmp.gt.bf16.partialorder %v2106, 0
      %vm2139 = vcmp.gt.bf16.partialorder %v2107, 0
      %vm2140 = vcmp.gt.bf16.partialorder %v2108, 0
      %vm2141 = vcmp.gt.bf16.partialorder %v2109, 0
      %vm2142 = vcmp.gt.bf16.partialorder %v2110, 0
      %vm2143 = vcmp.gt.bf16.partialorder %v2111, 0
      %vm2144 = vcmp.gt.bf16.partialorder %v2112, 0
      %vm2145 = vcmp.gt.bf16.partialorder %v2113, 0
      %vm2146 = vcmp.gt.bf16.partialorder %v2114, 0
      %vm2147 = vcmp.gt.bf16.partialorder %v2115, 0
      %vm2148 = vcmp.gt.bf16.partialorder %v2116, 0
      %vm2149 = vcmp.gt.bf16.partialorder %v2117, 0
      %vm2150 = vcmp.gt.bf16.partialorder %v2118, 0
      %vm2151 = vcmp.gt.bf16.partialorder %v2119, 0
      %vm2152 = vcmp.gt.bf16.partialorder %v2120, 0
      %vm2153 = vcmp.gt.bf16.partialorder %v2121, 0
      %vm2154 = vcmp.gt.bf16.partialorder %v2122, 0
      %vm2155 = vcmp.gt.bf16.partialorder %v2123, 0
      %vm2156 = vcmp.gt.bf16.partialorder %v2124, 0
      %vm2157 = vcmp.gt.bf16.partialorder %v2125, 0
      %vm2158 = vcmp.gt.bf16.partialorder %v2126, 0
      %vm2159 = vcmp.gt.bf16.partialorder %v2127, 0
      %vm2160 = vcmp.gt.bf16.partialorder %v2128, 0
      %vm2161 = vcmp.gt.bf16.partialorder %v2129, 0
      %vm2162 = vcmp.gt.bf16.partialorder %v2130, 0
      %vm2163 = vcmp.gt.bf16.partialorder %v2131, 0
      %vm2164 = vcmp.gt.bf16.partialorder %v2132, 0
      %v2165 = vmul.bf16 %v2101, 1045249613
      %v2166 = vmul.bf16 %v2102, 1045249613
      %v2167 = vmul.bf16 %v2103, 1045249613
      %v2168 = vmul.bf16 %v2104, 1045249613
      %v2169 = vmul.bf16 %v2105, 1045249613
      %v2170 = vmul.bf16 %v2106, 1045249613
      %v2171 = vmul.bf16 %v2107, 1045249613
      %v2172 = vmul.bf16 %v2108, 1045249613
      %v2173 = vmul.bf16 %v2109, 1045249613
      %v2174 = vmul.bf16 %v2110, 1045249613
      %v2175 = vmul.bf16 %v2111, 1045249613
      %v2176 = vmul.bf16 %v2112, 1045249613
      %v2177 = vmul.bf16 %v2113, 1045249613
      %v2178 = vmul.bf16 %v2114, 1045249613
      %v2179 = vmul.bf16 %v2115, 1045249613
      %v2180 = vmul.bf16 %v2116, 1045249613
      %v2181 = vmul.bf16 %v2117, 1045249613
      %v2182 = vmul.bf16 %v2118, 1045249613
      %v2183 = vmul.bf16 %v2119, 1045249613
      %v2184 = vmul.bf16 %v2120, 1045249613
      %v2185 = vmul.bf16 %v2121, 1045249613
      %v2186 = vmul.bf16 %v2122, 1045249613
      %v2187 = vmul.bf16 %v2123, 1045249613
      %v2188 = vmul.bf16 %v2124, 1045249613
      %v2189 = vmul.bf16 %v2125, 1045249613
      %v2190 = vmul.bf16 %v2126, 1045249613
      %v2191 = vmul.bf16 %v2127, 1045249613
      %v2192 = vmul.bf16 %v2128, 1045249613
      %v2193 = vmul.bf16 %v2129, 1045249613
      %v2194 = vmul.bf16 %v2130, 1045249613
      %v2195 = vmul.bf16 %v2131, 1045249613
      %v2196 = vmul.bf16 %v2132, 1045249613
      %v2197 = vsel %vm2133, %v2101, %v2165
      %v2198 = vsel %vm2134, %v2102, %v2166
      %v2199 = vsel %vm2135, %v2103, %v2167
      %v2200 = vsel %vm2136, %v2104, %v2168
      %v2201 = vsel %vm2137, %v2105, %v2169
      %v2202 = vsel %vm2138, %v2106, %v2170
      %v2203 = vsel %vm2139, %v2107, %v2171
      %v2204 = vsel %vm2140, %v2108, %v2172
      %v2205 = vsel %vm2141, %v2109, %v2173
      %v2206 = vsel %vm2142, %v2110, %v2174
      %v2207 = vsel %vm2143, %v2111, %v2175
      %v2208 = vsel %vm2144, %v2112, %v2176
      %v2209 = vsel %vm2145, %v2113, %v2177
      %v2210 = vsel %vm2146, %v2114, %v2178
      %v2211 = vsel %vm2147, %v2115, %v2179
      %v2212 = vsel %vm2148, %v2116, %v2180
      %v2213 = vsel %vm2149, %v2117, %v2181
      %v2214 = vsel %vm2150, %v2118, %v2182
      %v2215 = vsel %vm2151, %v2119, %v2183
      %v2216 = vsel %vm2152, %v2120, %v2184
      %v2217 = vsel %vm2153, %v2121, %v2185
      %v2218 = vsel %vm2154, %v2122, %v2186
      %v2219 = vsel %vm2155, %v2123, %v2187
      %v2220 = vsel %vm2156, %v2124, %v2188
      %v2221 = vsel %vm2157, %v2125, %v2189
      %v2222 = vsel %vm2158, %v2126, %v2190
      %v2223 = vsel %vm2159, %v2127, %v2191
      %v2224 = vsel %vm2160, %v2128, %v2192
      %v2225 = vsel %vm2161, %v2129, %v2193
      %v2226 = vsel %vm2162, %v2130, %v2194
      %v2227 = vsel %vm2163, %v2131, %v2195
      %v2228 = vsel %vm2164, %v2132, %v2196
      %v2229 = vld [vmem:[%s3] sm:$0xff]
      %v2230 = vld [vmem:[%s3 + $0x8] sm:$0xff]
      %v2231 = vld [vmem:[%s3 + $0x10] sm:$0xff]
      %v2232 = vld [vmem:[%s3 + $0x18] sm:$0xff]
      %v2233 = vld [vmem:[%s3 + $0x20] sm:$0xff]
      %v2234 = vld [vmem:[%s3 + $0x28] sm:$0xff]
      %v2235 = vld [vmem:[%s3 + $0x30] sm:$0xff]
      %v2236 = vld [vmem:[%s3 + $0x38] sm:$0xff]
      %v2237 = vld [vmem:[%s3 + $0x40] sm:$0xff]
      %v2238 = vld [vmem:[%s3 + $0x48] sm:$0xff]
      %v2239 = vld [vmem:[%s3 + $0x50] sm:$0xff]
      %v2240 = vld [vmem:[%s3 + $0x58] sm:$0xff]
      %v2241 = vld [vmem:[%s3 + $0x60] sm:$0xff]
      %v2242 = vld [vmem:[%s3 + $0x68] sm:$0xff]
      %v2243 = vld [vmem:[%s3 + $0x70] sm:$0xff]
      %v2244 = vld [vmem:[%s3 + $0x78] sm:$0xff]
      %v2245 = vld [vmem:[%s3 + $0x80] sm:$0xff]
      %v2246 = vld [vmem:[%s3 + $0x88] sm:$0xff]
      %v2247 = vld [vmem:[%s3 + $0x90] sm:$0xff]
      %v2248 = vld [vmem:[%s3 + $0x98] sm:$0xff]
      %v2249 = vld [vmem:[%s3 + $0xa0] sm:$0xff]
      %v2250 = vld [vmem:[%s3 + $0xa8] sm:$0xff]
      %v2251 = vld [vmem:[%s3 + $0xb0] sm:$0xff]
      %v2252 = vld [vmem:[%s3 + $0xb8] sm:$0xff]
      %v2253 = vld [vmem:[%s3 + $0xc0] sm:$0xff]
      %v2254 = vld [vmem:[%s3 + $0xc8] sm:$0xff]
      %v2255 = vld [vmem:[%s3 + $0xd0] sm:$0xff]
      %v2256 = vld [vmem:[%s3 + $0xd8] sm:$0xff]
      %v2257 = vld [vmem:[%s3 + $0xe0] sm:$0xff]
      %v2258 = vld [vmem:[%s3 + $0xe8] sm:$0xff]
      %v2259 = vld [vmem:[%s3 + $0xf0] sm:$0xff]
      %v2260 = vld [vmem:[%s3 + $0xf8] sm:$0xff]
      %v2293 = vunpack.c.l.b16 %v2229
      %v2294 = vunpack.c.h.b16 %v2229
      %v2295 = vunpack.c.l.b16 %v2230
      %v2296 = vunpack.c.h.b16 %v2230
      %v2297 = vunpack.c.l.b16 %v2231
      %v2298 = vunpack.c.h.b16 %v2231
      %v2299 = vunpack.c.l.b16 %v2232
      %v2300 = vunpack.c.h.b16 %v2232
      %v2301 = vunpack.c.l.b16 %v2233
      %v2302 = vunpack.c.h.b16 %v2233
      %v2303 = vunpack.c.l.b16 %v2234
      %v2304 = vunpack.c.h.b16 %v2234
      %v2305 = vunpack.c.l.b16 %v2235
      %v2306 = vunpack.c.h.b16 %v2235
      %v2307 = vunpack.c.l.b16 %v2236
      %v2308 = vunpack.c.h.b16 %v2236
      %v2309 = vunpack.c.l.b16 %v2237
      %v2310 = vunpack.c.h.b16 %v2237
      %v2311 = vunpack.c.l.b16 %v2238
      %v2312 = vunpack.c.h.b16 %v2238
      %v2313 = vunpack.c.l.b16 %v2239
      %v2314 = vunpack.c.h.b16 %v2239
      %v2315 = vunpack.c.l.b16 %v2240
      %v2316 = vunpack.c.h.b16 %v2240
      %v2317 = vunpack.c.l.b16 %v2241
      %v2318 = vunpack.c.h.b16 %v2241
      %v2319 = vunpack.c.l.b16 %v2242
      %v2320 = vunpack.c.h.b16 %v2242
      %v2321 = vunpack.c.l.b16 %v2243
      %v2322 = vunpack.c.h.b16 %v2243
      %v2323 = vunpack.c.l.b16 %v2244
      %v2324 = vunpack.c.h.b16 %v2244
      %v2325 = vunpack.c.l.b16 %v2245
      %v2326 = vunpack.c.h.b16 %v2245
      %v2327 = vunpack.c.l.b16 %v2246
      %v2328 = vunpack.c.h.b16 %v2246
      %v2329 = vunpack.c.l.b16 %v2247
      %v2330 = vunpack.c.h.b16 %v2247
      %v2331 = vunpack.c.l.b16 %v2248
      %v2332 = vunpack.c.h.b16 %v2248
      %v2333 = vunpack.c.l.b16 %v2249
      %v2334 = vunpack.c.h.b16 %v2249
      %v2335 = vunpack.c.l.b16 %v2250
      %v2336 = vunpack.c.h.b16 %v2250
      %v2337 = vunpack.c.l.b16 %v2251
      %v2338 = vunpack.c.h.b16 %v2251
      %v2339 = vunpack.c.l.b16 %v2252
      %v2340 = vunpack.c.h.b16 %v2252
      %v2341 = vunpack.c.l.b16 %v2253
      %v2342 = vunpack.c.h.b16 %v2253
      %v2343 = vunpack.c.l.b16 %v2254
      %v2344 = vunpack.c.h.b16 %v2254
      %v2345 = vunpack.c.l.b16 %v2255
      %v2346 = vunpack.c.h.b16 %v2255
      %v2347 = vunpack.c.l.b16 %v2256
      %v2348 = vunpack.c.h.b16 %v2256
      %v2349 = vunpack.c.l.b16 %v2257
      %v2350 = vunpack.c.h.b16 %v2257
      %v2351 = vunpack.c.l.b16 %v2258
      %v2352 = vunpack.c.h.b16 %v2258
      %v2353 = vunpack.c.l.b16 %v2259
      %v2354 = vunpack.c.h.b16 %v2259
      %v2355 = vunpack.c.l.b16 %v2260
      %v2356 = vunpack.c.h.b16 %v2260
      %v2357 = vpack.c.b16 %v2295, %v2293
      %v2358 = vpack.c.b16 %v2296, %v2294
      %v2359 = vpack.c.b16 %v2299, %v2297
      %v2360 = vpack.c.b16 %v2300, %v2298
      %v2361 = vpack.c.b16 %v2303, %v2301
      %v2362 = vpack.c.b16 %v2304, %v2302
      %v2363 = vpack.c.b16 %v2307, %v2305
      %v2364 = vpack.c.b16 %v2308, %v2306
      %v2365 = vpack.c.b16 %v2311, %v2309
      %v2366 = vpack.c.b16 %v2312, %v2310
      %v2367 = vpack.c.b16 %v2315, %v2313
      %v2368 = vpack.c.b16 %v2316, %v2314
      %v2369 = vpack.c.b16 %v2319, %v2317
      %v2370 = vpack.c.b16 %v2320, %v2318
      %v2371 = vpack.c.b16 %v2323, %v2321
      %v2372 = vpack.c.b16 %v2324, %v2322
      %v2373 = vpack.c.b16 %v2327, %v2325
      %v2374 = vpack.c.b16 %v2328, %v2326
      %v2375 = vpack.c.b16 %v2331, %v2329
      %v2376 = vpack.c.b16 %v2332, %v2330
      %v2377 = vpack.c.b16 %v2335, %v2333
      %v2378 = vpack.c.b16 %v2336, %v2334
      %v2379 = vpack.c.b16 %v2339, %v2337
      %v2380 = vpack.c.b16 %v2340, %v2338
      %v2381 = vpack.c.b16 %v2343, %v2341
      %v2382 = vpack.c.b16 %v2344, %v2342
      %v2383 = vpack.c.b16 %v2347, %v2345
      %v2384 = vpack.c.b16 %v2348, %v2346
      %v2385 = vpack.c.b16 %v2351, %v2349
      %v2386 = vpack.c.b16 %v2352, %v2350
      %v2387 = vpack.c.b16 %v2355, %v2353
      %v2388 = vpack.c.b16 %v2356, %v2354
      %2421 = vmatprep.subr.bf16.mxu0 %v2372
      %2422 = vmatpush1.bf16.msra.mxu0 %v2371
      %2423 = vmatprep.subr.bf16.mxu0 %v2370
      %2424 = vmatpush1.bf16.msra.mxu0 %v2369
      %2425 = vmatprep.subr.bf16.mxu0 %v2368
      %2426 = vmatpush1.bf16.msra.mxu0 %v2367
      %2427 = vmatprep.subr.bf16.mxu0 %v2366
      %2428 = vmatpush1.bf16.msra.mxu0 %v2365
      %2429 = vmatprep.subr.bf16.mxu0 %v2364
      %2430 = vmatpush1.bf16.msra.mxu0 %v2363
      %2431 = vmatprep.subr.bf16.mxu0 %v2362
      %2432 = vmatpush1.bf16.msra.mxu0 %v2361
      %2433 = vmatprep.subr.bf16.mxu0 %v2360
      %2434 = vmatpush1.bf16.msra.mxu0 %v2359
      %2435 = vmatprep.subr.bf16.mxu0 %v2358
      %2436 = vmatpush1.bf16.msra.mxu0 %v2357
      %2437 = vmatprep.subr.bf16.mxu0 %v2388
      %2438 = vmatpush2.bf16.msra.mxu0 %v2387
      %2439 = vmatprep.subr.bf16.mxu0 %v2386
      %2440 = vmatpush2.bf16.msra.mxu0 %v2385
      %2441 = vmatprep.subr.bf16.mxu0 %v2384
      %2442 = vmatpush2.bf16.msra.mxu0 %v2383
      %2443 = vmatprep.subr.bf16.mxu0 %v2382
      %2444 = vmatpush2.bf16.msra.mxu0 %v2381
      %2445 = vmatprep.subr.bf16.mxu0 %v2380
      %2446 = vmatpush2.bf16.msra.mxu0 %v2379
      %2447 = vmatprep.subr.bf16.mxu0 %v2378
      %2448 = vmatpush2.bf16.msra.mxu0 %v2377
      %2449 = vmatprep.subr.bf16.mxu0 %v2376
      %2450 = vmatpush2.bf16.msra.mxu0 %v2375
      %2451 = vmatprep.subr.bf16.mxu0 %v2374
      %2452 = vmatpush2.bf16.msra.mxu0 %v2373
      %2453 = vmatprep.mubr.bf16.mxu0 %v2198
      %2454 = vmatmul.mubr.bf16.gmra.mxu0 %v2197
      %v2455 = vpop.f32.mrf.mxu0
      %v2456 = vadd.f32 0.0, %v2455
      %v2457 = vpop.f32.mrf.mxu0
      %v2458 = vadd.f32 0.0, %v2457
      %v2459 = vpop.f32.mrf.mxu0
      %v2460 = vadd.f32 0.0, %v2459
      %v2461 = vpop.f32.mrf.mxu0
      %v2462 = vadd.f32 0.0, %v2461
      %2463 = vmatprep.mubr.bf16.mxu0 %v2200
      %2464 = vmatmul.mubr.bf16.gmra.mxu0 %v2199
      %v2465 = vpop.f32.mrf.mxu0
      %v2466 = vadd.f32 0.0, %v2465
      %v2467 = vpop.f32.mrf.mxu0
      %v2468 = vadd.f32 0.0, %v2467
      %v2469 = vpop.f32.mrf.mxu0
      %v2470 = vadd.f32 0.0, %v2469
      %v2471 = vpop.f32.mrf.mxu0
      %v2472 = vadd.f32 0.0, %v2471
      %2473 = vmatprep.mubr.bf16.mxu0 %v2202
      %2474 = vmatmul.mubr.bf16.gmra.mxu0 %v2201
      %v2475 = vpop.f32.mrf.mxu0
      %v2476 = vadd.f32 0.0, %v2475
      %v2477 = vpop.f32.mrf.mxu0
      %v2478 = vadd.f32 0.0, %v2477
      %v2479 = vpop.f32.mrf.mxu0
      %v2480 = vadd.f32 0.0, %v2479
      %v2481 = vpop.f32.mrf.mxu0
      %v2482 = vadd.f32 0.0, %v2481
      %2483 = vmatprep.mubr.bf16.mxu0 %v2204
      %2484 = vmatmul.mubr.bf16.gmra.mxu0 %v2203
      %v2485 = vpop.f32.mrf.mxu0
      %v2486 = vadd.f32 0.0, %v2485
      %v2487 = vpop.f32.mrf.mxu0
      %v2488 = vadd.f32 0.0, %v2487
      %v2489 = vpop.f32.mrf.mxu0
      %v2490 = vadd.f32 0.0, %v2489
      %v2491 = vpop.f32.mrf.mxu0
      %v2492 = vadd.f32 0.0, %v2491
      %2493 = vmatprep.mubr.bf16.mxu0 %v2206
      %2494 = vmatmul.mubr.bf16.gmra.mxu0 %v2205
      %v2495 = vpop.f32.mrf.mxu0
      %v2496 = vadd.f32 0.0, %v2495
      %v2497 = vpop.f32.mrf.mxu0
      %v2498 = vadd.f32 0.0, %v2497
      %v2499 = vpop.f32.mrf.mxu0
      %v2500 = vadd.f32 0.0, %v2499
      %v2501 = vpop.f32.mrf.mxu0
      %v2502 = vadd.f32 0.0, %v2501
      %2503 = vmatprep.mubr.bf16.mxu0 %v2208
      %2504 = vmatmul.mubr.bf16.gmra.mxu0 %v2207
      %v2505 = vpop.f32.mrf.mxu0
      %v2506 = vadd.f32 0.0, %v2505
      %v2507 = vpop.f32.mrf.mxu0
      %v2508 = vadd.f32 0.0, %v2507
      %v2509 = vpop.f32.mrf.mxu0
      %v2510 = vadd.f32 0.0, %v2509
      %v2511 = vpop.f32.mrf.mxu0
      %v2512 = vadd.f32 0.0, %v2511
      %2513 = vmatprep.mubr.bf16.mxu0 %v2210
      %2514 = vmatmul.mubr.bf16.gmra.mxu0 %v2209
      %v2515 = vpop.f32.mrf.mxu0
      %v2516 = vadd.f32 0.0, %v2515
      %v2517 = vpop.f32.mrf.mxu0
      %v2518 = vadd.f32 0.0, %v2517
      %v2519 = vpop.f32.mrf.mxu0
      %v2520 = vadd.f32 0.0, %v2519
      %v2521 = vpop.f32.mrf.mxu0
      %v2522 = vadd.f32 0.0, %v2521
      %2523 = vmatprep.mubr.bf16.mxu0 %v2212
      %2524 = vmatmul.mubr.bf16.gmra.mxu0 %v2211
      %v2525 = vpop.f32.mrf.mxu0
      %v2526 = vadd.f32 0.0, %v2525
      %v2527 = vpop.f32.mrf.mxu0
      %v2528 = vadd.f32 0.0, %v2527
      %v2529 = vpop.f32.mrf.mxu0
      %v2530 = vadd.f32 0.0, %v2529
      %v2531 = vpop.f32.mrf.mxu0
      %v2532 = vadd.f32 0.0, %v2531
      %2533 = vmatprep.mubr.bf16.mxu0 %v2214
      %2534 = vmatmul.mubr.bf16.gmra.mxu0 %v2213
      %v2535 = vpop.f32.mrf.mxu0
      %v2536 = vadd.f32 0.0, %v2535
      %v2537 = vpop.f32.mrf.mxu0
      %v2538 = vadd.f32 0.0, %v2537
      %v2539 = vpop.f32.mrf.mxu0
      %v2540 = vadd.f32 0.0, %v2539
      %v2541 = vpop.f32.mrf.mxu0
      %v2542 = vadd.f32 0.0, %v2541
      %2543 = vmatprep.mubr.bf16.mxu0 %v2216
      %2544 = vmatmul.mubr.bf16.gmra.mxu0 %v2215
      %v2545 = vpop.f32.mrf.mxu0
      %v2546 = vadd.f32 0.0, %v2545
      %v2547 = vpop.f32.mrf.mxu0
      %v2548 = vadd.f32 0.0, %v2547
      %v2549 = vpop.f32.mrf.mxu0
      %v2550 = vadd.f32 0.0, %v2549
      %v2551 = vpop.f32.mrf.mxu0
      %v2552 = vadd.f32 0.0, %v2551
      %2553 = vmatprep.mubr.bf16.mxu0 %v2218
      %2554 = vmatmul.mubr.bf16.gmra.mxu0 %v2217
      %v2555 = vpop.f32.mrf.mxu0
      %v2556 = vadd.f32 0.0, %v2555
      %v2557 = vpop.f32.mrf.mxu0
      %v2558 = vadd.f32 0.0, %v2557
      %v2559 = vpop.f32.mrf.mxu0
      %v2560 = vadd.f32 0.0, %v2559
      %v2561 = vpop.f32.mrf.mxu0
      %v2562 = vadd.f32 0.0, %v2561
      %2563 = vmatprep.mubr.bf16.mxu0 %v2220
      %2564 = vmatmul.mubr.bf16.gmra.mxu0 %v2219
      %v2565 = vpop.f32.mrf.mxu0
      %v2566 = vadd.f32 0.0, %v2565
      %v2567 = vpop.f32.mrf.mxu0
      %v2568 = vadd.f32 0.0, %v2567
      %v2569 = vpop.f32.mrf.mxu0
      %v2570 = vadd.f32 0.0, %v2569
      %v2571 = vpop.f32.mrf.mxu0
      %v2572 = vadd.f32 0.0, %v2571
      %2573 = vmatprep.mubr.bf16.mxu0 %v2222
      %2574 = vmatmul.mubr.bf16.gmra.mxu0 %v2221
      %v2575 = vpop.f32.mrf.mxu0
      %v2576 = vadd.f32 0.0, %v2575
      %v2577 = vpop.f32.mrf.mxu0
      %v2578 = vadd.f32 0.0, %v2577
      %v2579 = vpop.f32.mrf.mxu0
      %v2580 = vadd.f32 0.0, %v2579
      %v2581 = vpop.f32.mrf.mxu0
      %v2582 = vadd.f32 0.0, %v2581
      %2583 = vmatprep.mubr.bf16.mxu0 %v2224
      %2584 = vmatmul.mubr.bf16.gmra.mxu0 %v2223
      %v2585 = vpop.f32.mrf.mxu0
      %v2586 = vadd.f32 0.0, %v2585
      %v2587 = vpop.f32.mrf.mxu0
      %v2588 = vadd.f32 0.0, %v2587
      %v2589 = vpop.f32.mrf.mxu0
      %v2590 = vadd.f32 0.0, %v2589
      %v2591 = vpop.f32.mrf.mxu0
      %v2592 = vadd.f32 0.0, %v2591
      %2593 = vmatprep.mubr.bf16.mxu0 %v2226
      %2594 = vmatmul.mubr.bf16.gmra.mxu0 %v2225
      %v2595 = vpop.f32.mrf.mxu0
      %v2596 = vadd.f32 0.0, %v2595
      %v2597 = vpop.f32.mrf.mxu0
      %v2598 = vadd.f32 0.0, %v2597
      %v2599 = vpop.f32.mrf.mxu0
      %v2600 = vadd.f32 0.0, %v2599
      %v2601 = vpop.f32.mrf.mxu0
      %v2602 = vadd.f32 0.0, %v2601
      %2603 = vmatprep.mubr.bf16.mxu0 %v2228
      %2604 = vmatmul.mubr.bf16.gmra.mxu0 %v2227
      %v2605 = vpop.f32.mrf.mxu0
      %v2606 = vadd.f32 0.0, %v2605
      %v2607 = vpop.f32.mrf.mxu0
      %v2608 = vadd.f32 0.0, %v2607
      %v2609 = vpop.f32.mrf.mxu0
      %v2610 = vadd.f32 0.0, %v2609
      %v2611 = vpop.f32.mrf.mxu0
      %v2612 = vadd.f32 0.0, %v2611
      %2613 = vdwg.mxu0
      %v2614 = vpack.c.bf16 %v2460, %v2456
      %v2615 = vpack.c.bf16 %v2462, %v2458
      %v2616 = vpack.c.bf16 %v2470, %v2466
      %v2617 = vpack.c.bf16 %v2472, %v2468
      %v2618 = vpack.c.bf16 %v2480, %v2476
      %v2619 = vpack.c.bf16 %v2482, %v2478
      %v2620 = vpack.c.bf16 %v2490, %v2486
      %v2621 = vpack.c.bf16 %v2492, %v2488
      %v2622 = vpack.c.bf16 %v2500, %v2496
      %v2623 = vpack.c.bf16 %v2502, %v2498
      %v2624 = vpack.c.bf16 %v2510, %v2506
      %v2625 = vpack.c.bf16 %v2512, %v2508
      %v2626 = vpack.c.bf16 %v2520, %v2516
      %v2627 = vpack.c.bf16 %v2522, %v2518
      %v2628 = vpack.c.bf16 %v2530, %v2526
      %v2629 = vpack.c.bf16 %v2532, %v2528
      %v2630 = vpack.c.bf16 %v2540, %v2536
      %v2631 = vpack.c.bf16 %v2542, %v2538
      %v2632 = vpack.c.bf16 %v2550, %v2546
      %v2633 = vpack.c.bf16 %v2552, %v2548
      %v2634 = vpack.c.bf16 %v2560, %v2556
      %v2635 = vpack.c.bf16 %v2562, %v2558
      %v2636 = vpack.c.bf16 %v2570, %v2566
      %v2637 = vpack.c.bf16 %v2572, %v2568
      %v2638 = vpack.c.bf16 %v2580, %v2576
      %v2639 = vpack.c.bf16 %v2582, %v2578
      %v2640 = vpack.c.bf16 %v2590, %v2586
      %v2641 = vpack.c.bf16 %v2592, %v2588
      %v2642 = vpack.c.bf16 %v2600, %v2596
      %v2643 = vpack.c.bf16 %v2602, %v2598
      %v2644 = vpack.c.bf16 %v2610, %v2606
      %v2645 = vpack.c.bf16 %v2612, %v2608
      %v2646 = vld [vmem:[%s4] sm:$0x3]
      %v2649 = vunpack.c.l.s4 1966171168
      %v2650 = vunpack.c.0.s8 %v2649
      %v2651 = vlaneseq
      %v2652 = vshrl.u32 %v2651, 7
      %v2653 = vsub.s32 %v2650, %v2652
      %v2654 = vrot.slane %v2646, %v2653
      %v2655 = vcombine.high %v2654, %v2654
      %v2657 = vunpack.c.l.s4 1966171168
      %v2658 = vunpack.c.0.s8 %v2657
      %v2659 = vlaneseq
      %v2660 = vshrl.u32 %v2659, 7
      %v2661 = vsub.s32 %v2658, %v2660
      %v2662 = vrot.slane %v2654, %v2661
      %v2664 = vunpack.c.l.s4 1966171168
      %v2665 = vunpack.c.0.s8 %v2664
      %v2666 = vlaneseq
      %v2667 = vshrl.u32 %v2666, 7
      %v2668 = vsub.s32 %v2665, %v2667
      %v2669 = vrot.slane %v2655, %v2668
      %v2671 = vpack.i.b16 %v2662, %v2662
      %v2673 = vlaneseq
      %v2674 = vshrl.u32 %v2673, 7
      %v2675 = vsub.s32 0, %v2674
      %v2676 = vrot.slane %v2671, %v2675
      %v2678 = vpack.i.b16 %v2669, %v2669
      %v2680 = vlaneseq
      %v2681 = vshrl.u32 %v2680, 7
      %v2682 = vsub.s32 0, %v2681
      %v2683 = vrot.slane %v2678, %v2682
      %v2684 = vadd.bf16 %v2614, %v2676
      %v2685 = vadd.bf16 %v2615, %v2683
      %v2686 = vadd.bf16 %v2616, %v2676
      %v2687 = vadd.bf16 %v2617, %v2683
      %v2688 = vadd.bf16 %v2618, %v2676
      %v2689 = vadd.bf16 %v2619, %v2683
      %v2690 = vadd.bf16 %v2620, %v2676
      %v2691 = vadd.bf16 %v2621, %v2683
      %v2692 = vadd.bf16 %v2622, %v2676
      %v2693 = vadd.bf16 %v2623, %v2683
      %v2694 = vadd.bf16 %v2624, %v2676
      %v2695 = vadd.bf16 %v2625, %v2683
      %v2696 = vadd.bf16 %v2626, %v2676
      %v2697 = vadd.bf16 %v2627, %v2683
      %v2698 = vadd.bf16 %v2628, %v2676
      %v2699 = vadd.bf16 %v2629, %v2683
      %v2700 = vadd.bf16 %v2630, %v2676
      %v2701 = vadd.bf16 %v2631, %v2683
      %v2702 = vadd.bf16 %v2632, %v2676
      %v2703 = vadd.bf16 %v2633, %v2683
      %v2704 = vadd.bf16 %v2634, %v2676
      %v2705 = vadd.bf16 %v2635, %v2683
      %v2706 = vadd.bf16 %v2636, %v2676
      %v2707 = vadd.bf16 %v2637, %v2683
      %v2708 = vadd.bf16 %v2638, %v2676
      %v2709 = vadd.bf16 %v2639, %v2683
      %v2710 = vadd.bf16 %v2640, %v2676
      %v2711 = vadd.bf16 %v2641, %v2683
      %v2712 = vadd.bf16 %v2642, %v2676
      %v2713 = vadd.bf16 %v2643, %v2683
      %v2714 = vadd.bf16 %v2644, %v2676
      %v2715 = vadd.bf16 %v2645, %v2683
      %vm2716 = vcmp.gt.bf16.partialorder %v2684, 0
      %vm2717 = vcmp.gt.bf16.partialorder %v2685, 0
      %vm2718 = vcmp.gt.bf16.partialorder %v2686, 0
      %vm2719 = vcmp.gt.bf16.partialorder %v2687, 0
      %vm2720 = vcmp.gt.bf16.partialorder %v2688, 0
      %vm2721 = vcmp.gt.bf16.partialorder %v2689, 0
      %vm2722 = vcmp.gt.bf16.partialorder %v2690, 0
      %vm2723 = vcmp.gt.bf16.partialorder %v2691, 0
      %vm2724 = vcmp.gt.bf16.partialorder %v2692, 0
      %vm2725 = vcmp.gt.bf16.partialorder %v2693, 0
      %vm2726 = vcmp.gt.bf16.partialorder %v2694, 0
      %vm2727 = vcmp.gt.bf16.partialorder %v2695, 0
      %vm2728 = vcmp.gt.bf16.partialorder %v2696, 0
      %vm2729 = vcmp.gt.bf16.partialorder %v2697, 0
      %vm2730 = vcmp.gt.bf16.partialorder %v2698, 0
      %vm2731 = vcmp.gt.bf16.partialorder %v2699, 0
      %vm2732 = vcmp.gt.bf16.partialorder %v2700, 0
      %vm2733 = vcmp.gt.bf16.partialorder %v2701, 0
      %vm2734 = vcmp.gt.bf16.partialorder %v2702, 0
      %vm2735 = vcmp.gt.bf16.partialorder %v2703, 0
      %vm2736 = vcmp.gt.bf16.partialorder %v2704, 0
      %vm2737 = vcmp.gt.bf16.partialorder %v2705, 0
      %vm2738 = vcmp.gt.bf16.partialorder %v2706, 0
      %vm2739 = vcmp.gt.bf16.partialorder %v2707, 0
      %vm2740 = vcmp.gt.bf16.partialorder %v2708, 0
      %vm2741 = vcmp.gt.bf16.partialorder %v2709, 0
      %vm2742 = vcmp.gt.bf16.partialorder %v2710, 0
      %vm2743 = vcmp.gt.bf16.partialorder %v2711, 0
      %vm2744 = vcmp.gt.bf16.partialorder %v2712, 0
      %vm2745 = vcmp.gt.bf16.partialorder %v2713, 0
      %vm2746 = vcmp.gt.bf16.partialorder %v2714, 0
      %vm2747 = vcmp.gt.bf16.partialorder %v2715, 0
      %v2748 = vmul.bf16 %v2684, 1045249613
      %v2749 = vmul.bf16 %v2685, 1045249613
      %v2750 = vmul.bf16 %v2686, 1045249613
      %v2751 = vmul.bf16 %v2687, 1045249613
      %v2752 = vmul.bf16 %v2688, 1045249613
      %v2753 = vmul.bf16 %v2689, 1045249613
      %v2754 = vmul.bf16 %v2690, 1045249613
      %v2755 = vmul.bf16 %v2691, 1045249613
      %v2756 = vmul.bf16 %v2692, 1045249613
      %v2757 = vmul.bf16 %v2693, 1045249613
      %v2758 = vmul.bf16 %v2694, 1045249613
      %v2759 = vmul.bf16 %v2695, 1045249613
      %v2760 = vmul.bf16 %v2696, 1045249613
      %v2761 = vmul.bf16 %v2697, 1045249613
      %v2762 = vmul.bf16 %v2698, 1045249613
      %v2763 = vmul.bf16 %v2699, 1045249613
      %v2764 = vmul.bf16 %v2700, 1045249613
      %v2765 = vmul.bf16 %v2701, 1045249613
      %v2766 = vmul.bf16 %v2702, 1045249613
      %v2767 = vmul.bf16 %v2703, 1045249613
      %v2768 = vmul.bf16 %v2704, 1045249613
      %v2769 = vmul.bf16 %v2705, 1045249613
      %v2770 = vmul.bf16 %v2706, 1045249613
      %v2771 = vmul.bf16 %v2707, 1045249613
      %v2772 = vmul.bf16 %v2708, 1045249613
      %v2773 = vmul.bf16 %v2709, 1045249613
      %v2774 = vmul.bf16 %v2710, 1045249613
      %v2775 = vmul.bf16 %v2711, 1045249613
      %v2776 = vmul.bf16 %v2712, 1045249613
      %v2777 = vmul.bf16 %v2713, 1045249613
      %v2778 = vmul.bf16 %v2714, 1045249613
      %v2779 = vmul.bf16 %v2715, 1045249613
      %v2780 = vsel %vm2716, %v2684, %v2748
      %v2781 = vsel %vm2717, %v2685, %v2749
      %v2782 = vsel %vm2718, %v2686, %v2750
      %v2783 = vsel %vm2719, %v2687, %v2751
      %v2784 = vsel %vm2720, %v2688, %v2752
      %v2785 = vsel %vm2721, %v2689, %v2753
      %v2786 = vsel %vm2722, %v2690, %v2754
      %v2787 = vsel %vm2723, %v2691, %v2755
      %v2788 = vsel %vm2724, %v2692, %v2756
      %v2789 = vsel %vm2725, %v2693, %v2757
      %v2790 = vsel %vm2726, %v2694, %v2758
      %v2791 = vsel %vm2727, %v2695, %v2759
      %v2792 = vsel %vm2728, %v2696, %v2760
      %v2793 = vsel %vm2729, %v2697, %v2761
      %v2794 = vsel %vm2730, %v2698, %v2762
      %v2795 = vsel %vm2731, %v2699, %v2763
      %v2796 = vsel %vm2732, %v2700, %v2764
      %v2797 = vsel %vm2733, %v2701, %v2765
      %v2798 = vsel %vm2734, %v2702, %v2766
      %v2799 = vsel %vm2735, %v2703, %v2767
      %v2800 = vsel %vm2736, %v2704, %v2768
      %v2801 = vsel %vm2737, %v2705, %v2769
      %v2802 = vsel %vm2738, %v2706, %v2770
      %v2803 = vsel %vm2739, %v2707, %v2771
      %v2804 = vsel %vm2740, %v2708, %v2772
      %v2805 = vsel %vm2741, %v2709, %v2773
      %v2806 = vsel %vm2742, %v2710, %v2774
      %v2807 = vsel %vm2743, %v2711, %v2775
      %v2808 = vsel %vm2744, %v2712, %v2776
      %v2809 = vsel %vm2745, %v2713, %v2777
      %v2810 = vsel %vm2746, %v2714, %v2778
      %v2811 = vsel %vm2747, %v2715, %v2779
      %v2812 = vld [vmem:[%s5] sm:$0xff]
      %v2813 = vld [vmem:[%s6] sm:$0xff]
      %2815 = vset.pattern.permute.xlu0 0
      %2816 = vperm.xlu0 %2815, %v2813
      %v2817 = vpop.permute.xlu0 %2816
      %v2820 = vunpack.c.l.b16 %v2812
      %v2821 = vunpack.c.h.b16 %v2812
      %v2822 = vpack.c.b16 %v2820, %v2820
      %v2823 = vpack.c.b16 %v2821, %v2821
      %2826 = vmatprep.subr.bf16.mxu0 %v2795
      %2827 = vmatpush1.bf16.xpose.msra.mxu0 %v2794
      %2828 = vmatprep.subr.bf16.mxu0 %v2793
      %2829 = vmatpush1.bf16.xpose.msra.mxu0 %v2792
      %2830 = vmatprep.subr.bf16.mxu0 %v2791
      %2831 = vmatpush1.bf16.xpose.msra.mxu0 %v2790
      %2832 = vmatprep.subr.bf16.mxu0 %v2789
      %2833 = vmatpush1.bf16.xpose.msra.mxu0 %v2788
      %2834 = vmatprep.subr.bf16.mxu0 %v2787
      %2835 = vmatpush1.bf16.xpose.msra.mxu0 %v2786
      %2836 = vmatprep.subr.bf16.mxu0 %v2785
      %2837 = vmatpush1.bf16.xpose.msra.mxu0 %v2784
      %2838 = vmatprep.subr.bf16.mxu0 %v2783
      %2839 = vmatpush1.bf16.xpose.msra.mxu0 %v2782
      %2840 = vmatprep.subr.bf16.mxu0 %v2781
      %2841 = vmatpush1.bf16.xpose.msra.mxu0 %v2780
      %2842 = vmatprep.subr.bf16.mxu0 %v2811
      %2843 = vmatpush2.bf16.xpose.msra.mxu0 %v2810
      %2844 = vmatprep.subr.bf16.mxu0 %v2809
      %2845 = vmatpush2.bf16.xpose.msra.mxu0 %v2808
      %2846 = vmatprep.subr.bf16.mxu0 %v2807
      %2847 = vmatpush2.bf16.xpose.msra.mxu0 %v2806
      %2848 = vmatprep.subr.bf16.mxu0 %v2805
      %2849 = vmatpush2.bf16.xpose.msra.mxu0 %v2804
      %2850 = vmatprep.subr.bf16.mxu0 %v2803
      %2851 = vmatpush2.bf16.xpose.msra.mxu0 %v2802
      %2852 = vmatprep.subr.bf16.mxu0 %v2801
      %2853 = vmatpush2.bf16.xpose.msra.mxu0 %v2800
      %2854 = vmatprep.subr.bf16.mxu0 %v2799
      %2855 = vmatpush2.bf16.xpose.msra.mxu0 %v2798
      %2856 = vmatprep.subr.bf16.mxu0 %v2797
      %2857 = vmatpush2.bf16.xpose.msra.mxu0 %v2796
      %2858 = vmatprep.mubr.bf16.mxu0 %v2823
      %2859 = vmatmul.mubr.bf16.gmra.mxu0 %v2822
      %v2860 = vpop.f32.mrf.mxu0
      %v2861 = vadd.f32 %v2817, %v2860
      %v2862 = vpop.f32.mrf.mxu0
      %v2863 = vadd.f32 %v2817, %v2862
      %v2864 = vpop.f32.mrf.mxu0
      %v2865 = vpop.f32.mrf.mxu0
      %2866 = vdwg.mxu0
      %v2867 = vsub.f32 0.0, %v2861
      %v2868 = vsub.f32 0.0, %v2863
      %v2869 = vmul.f32 %v2867, 1.442695
      %v2870 = vpow.pop %v2869
      %v2871 = vmul.f32 %v2868, 1.442695
      %v2872 = vpow.pop %v2871
      %v2873 = vadd.f32 %v2870, 1.0
      %v2874 = vadd.f32 %v2872, 1.0
      %v2875 = vrcp.pop %v2873
      %v2876 = vmul.f32 1.0, %v2875
      %v2877 = vrcp.pop %v2874
      %v2878 = vmul.f32 1.0, %v2877
      %2879 = vst [vmem:[%s283] sm:$0xff] %v2876
      %2880 = vst [vmem:[%s283 + $0x8] sm:$0xff] %v2878
      %p2881 = scmp.lt.s32.totalorder %s18, 1
      %s2882 = scalar_select %p2881, %s18, 1
      %s2883 = smul.addr %s2882, 2
      %s2884 = smul.addr %s2883, 8
      %s2885 = scalar_lea.vmem %s7, %s2884
      // Predicated region
      $region49: #{discriminator_forward.1} parent=47 // pred_check
        %p2886 = pneg %p188
      $region50: #{discriminator_forward.1} parent=47 // pred_check_branch
        %2888 = sbr.rel (%p2886) target = $region52
      $region51: #{discriminator_forward.1} parent=47 // pred_region
        _
      $region52: #{discriminator_forward.1} parent=47 // pred_fallthru
        _
    $region48: #{discriminator_forward.1} parent=5 // pred_fallthru
      _
    %p2889 = scmp.le.s32.totalorder 2, %s13
    // Predicated region
    $region53: #{discriminator_forward.1} parent=5 // pred_check
      %p2890 = pneg %p2889
    $region54: #{discriminator_forward.1} parent=5 // pred_check_branch
      %2892 = sbr.rel (%p2890) target = $region56
    $region55: #{discriminator_forward.1} parent=5 // pred_region
      %s2893 = ssub.s32 %s13, 2
      // Predicated region
      $region57: #{discriminator_forward.1} parent=55 // pred_check
        %p2894 = pneg %p194
      $region58: #{discriminator_forward.1} parent=55 // pred_check_branch
        %2896 = sbr.rel (%p2894) target = $region60
      $region59: #{discriminator_forward.1} parent=55 // pred_region
        %p2897 = scmp.lt.s32.totalorder %s19, 1
        %s2898 = scalar_select %p2897, %s19, 1
        %s2899 = smul.addr %s2898, 2
        %s2900 = smul.addr %s2899, 8
        %s2901 = scalar_lea.vmem %s7, %s2900
      $region60: #{discriminator_forward.1} parent=55 // pred_fallthru
        _
    $region56: #{discriminator_forward.1} parent=5 // pred_fallthru
      _
  $region6: #{discriminator_forward.1} parent=0 // loop_footer
    %s17 = sadd.s32 1, %s13
  $region7: #{discriminator_forward.1} parent=0 // loop_footer_branch
    %12 = sbr.rel target = $region3
  $region8: #{discriminator_forward.1} parent=0 // loop_exit
    _

</llo_original>
